<compile_context>
chip_gen: v7x
topology: tpu7x:2x2x1
jax: 0.10.0
libtpu: 0.0.40
codegen_flags: <defaults>
</compile_context>

<pallas_src>
import math
import functools

import jax
import jax.numpy as jnp
from jax import lax
from jax.experimental import pallas as pl
from jax.experimental.pallas import tpu as pltpu


# --------------------------------------------------------------------------
# Small helpers
# --------------------------------------------------------------------------
@functools.lru_cache(maxsize=None)
def _vmem_limit_bytes() -> int:
    """Per-generation scoped-VMEM request (v7x: ~48 of 64 MiB; v5e/v6e: ~96 of 128 MiB)."""
    cap = None
    try:
        cap = getattr(pltpu.get_tpu_info(), "vmem_capacity_bytes", None)
    except Exception:
        cap = None
    if not cap or cap <= 0:
        cap = 64 * 1024 * 1024  # conservative fallback = v7x physical VMEM
    return int(min(0.75 * cap, 100 * 1024 * 1024))


def _sublane_align(dtype) -> int:
    """Sublane alignment for second-to-last block dims: 8 f32 / 16 bf16 / 32 int8-fp8."""
    return max(8, 32 // jnp.dtype(dtype).itemsize)


def _tile_multiple(dim: int, preferred: int, align: int) -> int:
    """Largest tile <= preferred that divides `dim` and is a multiple of `align`.

    Falls back to the full dimension (always a legal BlockSpec) if no aligned
    divisor exists or the dimension is already small."""
    if dim <= preferred:
        return dim
    t = (min(preferred, dim) // align) * align
    while t >= align:
        if dim % t == 0:
            return t
        t -= align
    # TODO(synk): add a padded / remainder path for dims with no aligned divisor.
    return dim


# --------------------------------------------------------------------------
# Kernel 1: dense linear  y = x @ w_t   (w_t stored as (in, out))
#   - weight-resident variant: weight fetched once, grid only over M
#   - tiled variant: grid (M/tm, N/tn, K/tk) with f32 VMEM accumulator
# --------------------------------------------------------------------------
def _linear_resident_kernel(x_ref, w_ref, o_ref):
    o_ref[...] = jnp.dot(
        x_ref[...], w_ref[...], preferred_element_type=jnp.float32
    ).astype(o_ref.dtype)


def _linear_tiled_kernel(x_ref, w_ref, o_ref, acc_ref):
    @pl.when(pl.program_id(2) == 0)
    def _():
        acc_ref[...] = jnp.zeros_like(acc_ref)

    acc_ref[...] += jnp.dot(
        x_ref[...], w_ref[...], preferred_element_type=jnp.float32
    )

    @pl.when(pl.program_id(2) == pl.num_programs(2) - 1)
    def _():
        o_ref[...] = acc_ref[...].astype(o_ref.dtype)


def pallas_linear(x, w_t, *, out_dtype=None, block_m=512, block_n=512, block_k=512):
    """x: (M, K), w_t: (K, N) (already transposed).  Returns (M, N)."""
    M, K = x.shape
    K2, N = w_t.shape
    assert K == K2, f"shape mismatch: {x.shape} @ {w_t.shape}"
    if out_dtype is None:
        out_dtype = x.dtype

    vmem_limit = _vmem_limit_bytes()
    in_b = jnp.dtype(x.dtype).itemsize
    w_b = jnp.dtype(w_t.dtype).itemsize
    out_b = jnp.dtype(out_dtype).itemsize
    tm = _tile_multiple(M, block_m, _sublane_align(x.dtype))

    # ---- weight-resident path: whole (K, N) weight lives in VMEM for the grid ----
    resident_bytes = (
        2 * K * N * w_b            # weight (worst case double-buffered)
        + 2 * tm * K * in_b        # double-buffered x tile
        + 2 * tm * N * out_b       # double-buffered out tile
    )
    if resident_bytes <= int(0.7 * vmem_limit):
        return pl.pallas_call(
            _linear_resident_kernel,
            out_shape=jax.ShapeDtypeStruct((M, N), out_dtype),
            grid_spec=pltpu.PrefetchScalarGridSpec(
                num_scalar_prefetch=0,
                grid=(M // tm,),
                in_specs=[
                    pl.BlockSpec((tm, K), lambda i: (i, 0)),
                    pl.BlockSpec((K, N), lambda i: (0, 0)),  # constant index => one DMA
                ],
                out_specs=pl.BlockSpec((tm, N), lambda i: (i, 0)),
            ),
            compiler_params=pltpu.CompilerParams(
                dimension_semantics=("parallel",),
                vmem_limit_bytes=vmem_limit,
            ),
        )(x, w_t)

    # ---- general tiled path (K-reduction on the innermost grid axis) ----
    tn = _tile_multiple(N, block_n, 128)
    tk = _tile_multiple(K, block_k, 128)
    grid = (M // tm, N // tn, K // tk)
    return pl.pallas_call(
        _linear_tiled_kernel,
        out_shape=jax.ShapeDtypeStruct((M, N), out_dtype),
        grid_spec=pltpu.PrefetchScalarGridSpec(
            num_scalar_prefetch=0,
            grid=grid,
            in_specs=[
                pl.BlockSpec((tm, tk), lambda i, j, k: (i, k)),
                pl.BlockSpec((tk, tn), lambda i, j, k: (k, j)),
            ],
            out_specs=pl.BlockSpec((tm, tn), lambda i, j, k: (i, j)),
            scratch_shapes=[pltpu.VMEM((tm, tn), jnp.float32)],
        ),
        compiler_params=pltpu.CompilerParams(
            dimension_semantics=("parallel", "parallel", "arbitrary"),
            vmem_limit_bytes=vmem_limit,
        ),
    )(x, w_t)


# --------------------------------------------------------------------------
# Kernel 2: flash-attention style scaled dot-product attention.
# Grid: (B, head-groups, Sq tiles, Sk tiles).  Online softmax scratch in VMEM.
# Each block holds `heads_per_block` heads so the lane width stays >= 128
# even for small d_k (no HBM head-split transposes).
# --------------------------------------------------------------------------
def _flash_sdpa_kernel(*refs, d_k, heads_per_block, mask_mode, causal, tq, tk):
    if mask_mode != "none":
        q_ref, k_ref, v_ref, msk_ref, o_ref, m_sc, l_sc, acc_sc = refs
    else:
        q_ref, k_ref, v_ref, o_ref, m_sc, l_sc, acc_sc = refs
        msk_ref = None

    qi = pl.program_id(2)
    ki = pl.program_id(3)

    @pl.when(ki == 0)
    def _():
        m_sc[...] = jnp.full_like(m_sc, -jnp.inf)
        l_sc[...] = jnp.zeros_like(l_sc)
        acc_sc[...] = jnp.zeros_like(acc_sc)

    def compute_tile():
        q = q_ref[...]                       # (tq, gw)  scale already folded into W_q
        k = k_ref[...]                       # (tk, gw)
        v = v_ref[...]                       # (tk, gw)
        neg = jnp.float32(-1.0e10)

        keep = None
        if msk_ref is not None:
            keep = msk_ref[...] != 0         # (1, tk) or (tq, tk) bool, int8 operand
        if causal:
            row = qi * tq + lax.broadcasted_iota(jnp.int32, (tq, tk), 0)
            col = ki * tk + lax.broadcasted_iota(jnp.int32, (tq, tk), 1)
            ck = row >= col
            keep = ck if keep is None else jnp.logical_and(keep, ck)

        for h in range(heads_per_block):     # static unroll; 1 iteration when d_k >= 128
            sl = slice(h * d_k, (h + 1) * d_k)
            hs = slice(h, h + 1)

            # QK^T without an explicit transpose: contract the last dims directly.
            s = lax.dot_general(
                q[:, sl], k[:, sl],
                dimension_numbers=(((1,), (1,)), ((), ())),
                preferred_element_type=jnp.float32,
            )                                # (tq, tk) f32
            if keep is not None:
                s = jnp.where(keep, s, neg)

            m_prev = m_sc[:, hs]             # (tq, 1)
            m_new = jnp.maximum(m_prev, jnp.max(s, axis=-1, keepdims=True))
            alpha = jnp.exp(m_prev - m_new)
            p = jnp.exp(s - m_new)           # (tq, tk) f32

            l_sc[:, hs] = alpha * l_sc[:, hs] + jnp.sum(p, axis=-1, keepdims=True)
            acc_sc[:, sl] = alpha * acc_sc[:, sl] + jnp.dot(
                p.astype(v.dtype), v[:, sl], preferred_element_type=jnp.float32
            )
            m_sc[:, hs] = m_new

    if causal:
        # Causal skip: above-diagonal tiles are never computed (and their K/V DMA
        # is deduped because the KV index_map is clamped to the diagonal block).
        pl.when(ki * tk <= qi * tq + (tq - 1))(compute_tile)
    else:
        compute_tile()

    @pl.when(ki == pl.num_programs(3) - 1)
    def _():
        for h in range(heads_per_block):
            sl = slice(h * d_k, (h + 1) * d_k)
            hs = slice(h, h + 1)
            inv_l = pl.reciprocal(l_sc[:, hs], approx=True)  # EUP slot, finalize only
            o_ref[:, sl] = (acc_sc[:, sl] * inv_l).astype(o_ref.dtype)


def pallas_flash_sdpa(q_arr, k_arr, v_arr, mask, mask_mode, num_heads, *,
                      d_model, seq_q, seq_k, batch, causal, out_dtype,
                      block_q=256, block_k=256, q_col0=0, k_col0=0, v_col0=0):
    """q/k/v_arr: (B, S, *) packed-head activations; the q/k/v columns start at
    q_col0/k_col0/v_col0 in the last dim (all three may alias the same fused QKV
    array).  mask: None, (B,1,Sk) int8, (1,Sq,Sk) int8 or (B,Sq,Sk) int8.
    Returns context (B, seq_q, d_model) with heads merged."""
    assert d_model % num_heads == 0
    d_k = d_model // num_heads

    # Head grouping: keep the block lane width >= 128 (or the full d_model).
    if d_k % 128 == 0:
        hpb, gw = 1, d_k
    elif (128 % d_k == 0) and (d_model % 128 == 0):
        hpb, gw = 128 // d_k, 128
    else:
        hpb, gw = num_heads, d_model
    groups = num_heads // hpb
    assert q_col0 % gw == 0 and k_col0 % gw == 0 and v_col0 % gw == 0
    qg0, kg0, vg0 = q_col0 // gw, k_col0 // gw, v_col0 // gw

    tq = _tile_multiple(seq_q, block_q, _sublane_align(q_arr.dtype))
    tk = _tile_multiple(seq_k, block_k, 128)
    grid = (batch, groups, seq_q // tq, seq_k // tk)

    if causal:
        def kv_block(qi, ki):
            # Clamp to the last tile that intersects the diagonal => DMA dedup.
            return jnp.minimum(ki, (qi * tq + (tq - 1)) // tk)
    else:
        def kv_block(qi, ki):
            return ki

    in_specs = [
        pl.BlockSpec((None, tq, gw), lambda b, g, qi, ki: (b, qi, qg0 + g)),
        pl.BlockSpec((None, tk, gw), lambda b, g, qi, ki: (b, kv_block(qi, ki), kg0 + g)),
        pl.BlockSpec((None, tk, gw), lambda b, g, qi, ki: (b, kv_block(qi, ki), vg0 + g)),
    ]
    inputs = [q_arr, k_arr, v_arr]
    if mask_mode == "kv":       # (B, 1, Sk) int8, broadcast over q rows and heads
        in_specs.append(pl.BlockSpec((None, 1, tk),
                                     lambda b, g, qi, ki: (b, 0, kv_block(qi, ki))))
        inputs.append(mask)
    elif mask_mode == "qk":     # (1, Sq, Sk) int8, shared across batch and heads
        in_specs.append(pl.BlockSpec((None, tq, tk),
                                     lambda b, g, qi, ki: (0, qi, kv_block(qi, ki))))
        inputs.append(mask)
    elif mask_mode == "full":   # (B, Sq, Sk) int8, shared across heads
        in_specs.append(pl.BlockSpec((None, tq, tk),
                                     lambda b, g, qi, ki: (b, qi, kv_block(qi, ki))))
        inputs.append(mask)

    kern = functools.partial(
        _flash_sdpa_kernel, d_k=d_k, heads_per_block=hpb,
        mask_mode=mask_mode, causal=causal, tq=tq, tk=tk,
    )

    return pl.pallas_call(
        kern,
        out_shape=jax.ShapeDtypeStruct((batch, seq_q, d_model), out_dtype),
        grid_spec=pltpu.PrefetchScalarGridSpec(
            num_scalar_prefetch=0,
            grid=grid,
            in_specs=in_specs,
            out_specs=pl.BlockSpec((None, tq, gw), lambda b, g, qi, ki: (b, qi, g)),
            scratch_shapes=[
                pltpu.VMEM((tq, hpb), jnp.float32),   # running max  m  (per head)
                pltpu.VMEM((tq, hpb), jnp.float32),   # running sum  l  (per head)
                pltpu.VMEM((tq, gw), jnp.float32),    # running output accumulator
            ],
        ),
        compiler_params=pltpu.CompilerParams(
            dimension_semantics=("parallel", "parallel", "parallel", "arbitrary"),
            vmem_limit_bytes=_vmem_limit_bytes(),
        ),
    )(*inputs)


# --------------------------------------------------------------------------
# MultiHeadedAttention forward (parameters held in a dict)
# --------------------------------------------------------------------------
def init_mha_params(key, d_model):
    """nn.Linear(d_model, d_model, bias=False)-style init.

    Weights are generated in PyTorch (out, in) convention and stored transposed
    (in, out) ONCE here; a fused (d_model, 3*d_model) QKV weight is also stored
    so self-attention reads the activations from HBM exactly once."""
    ks = jax.random.split(key, 4)
    bound = 1.0 / math.sqrt(d_model)

    def w_t(k):
        w_pt = jax.random.uniform(
            k, (d_model, d_model), dtype=jnp.float32, minval=-bound, maxval=bound
        )
        return jnp.transpose(w_pt)  # stored as (in, out)

    p = {
        "w_query_t": w_t(ks[0]),
        "w_key_t": w_t(ks[1]),
        "w_value_t": w_t(ks[2]),
        "final_linear_t": w_t(ks[3]),
    }
    p["w_qkv_t"] = jnp.concatenate(
        [p["w_query_t"], p["w_key_t"], p["w_value_t"]], axis=1
    )  # (d_model, 3*d_model)
    return p


def _canonicalize_mask(mask, B, Sq, Sk):
    """Map the module's supported mask shapes to a compact int8 mask + mode.

    Never materializes a (B, Sq, Sk) broadcast unless the caller already passed one.
    Returns (mask_int8, mode) with mode in {"none", "kv", "qk", "full"}."""
    if mask is None:
        return None, "none"
    m = jnp.asarray(mask)
    if m.ndim == 2:
        if m.shape == (B, Sk):
            m, mode = m[:, None, :], "kv"          # padding mask (B, 1, Sk)
        elif m.shape == (Sq, Sk):
            m, mode = m[None, :, :], "qk"          # look-ahead mask (1, Sq, Sk)
        else:
            raise ValueError(f"Unsupported mask shape: {m.shape}")
    elif m.ndim == 3:
        assert m.shape == (B, Sq, Sk), f"Unsupported mask shape: {m.shape}"
        mode = "full"
    elif m.ndim == 4:
        if m.shape[1] == 1:
            m, mode = m[:, 0], "full"
        else:
            # TODO(synk): per-head (B, H, Sq, Sk) masks would need an H-indexed mask spec.
            raise NotImplementedError("per-head 4-D masks are not supported")
    else:
        raise ValueError(f"Unsupported mask rank: {m.ndim}")
    return (m != 0).astype(jnp.int8), mode         # 4x less DMA than f32


def multi_headed_attention(params, query, key, value, num_heads, mask=None, *,
                           causal=False, compute_dtype=jnp.bfloat16,
                           block_q=256, block_k=256):
    """
    query: (B, Sq, d_model), key/value: (B, Sk, d_model)
    mask (optional): (B, Sk) | (Sq, Sk) | (B, Sq, Sk) | (B, 1, Sq, Sk); 0 => masked.
    causal: build the look-ahead mask in-kernel (no mask operand, skips
            above-diagonal tiles); may be combined with an explicit mask.
    compute_dtype: MXU operand dtype (bf16 default on v5e/v6e/v7x); accumulation
                   and softmax statistics stay f32.
    Returns: (B, Sq, d_model) in query.dtype.
    """
    B, Sq, d_model = query.shape
    Sk = key.shape[1]
    assert d_model % num_heads == 0
    d_k = d_model // num_heads
    scale = 1.0 / math.sqrt(d_k)
    out_dtype = query.dtype
    cd = compute_dtype

    mask_arr, mask_mode = _canonicalize_mask(mask, B, Sq, Sk)

    # Fold 1/sqrt(d_k) into the query projection weight (d_model^2 work, once per
    # call) instead of scaling q inside the flash inner loop.
    self_attn = (query is key) and (key is value) and ("w_qkv_t" in params)
    if self_attn:
        col_scale = jnp.concatenate(
            [jnp.full((d_model,), scale, jnp.float32),
             jnp.ones((2 * d_model,), jnp.float32)]
        )
        w_qkv = (params["w_qkv_t"] * col_scale).astype(cd)
        x = query.reshape(B * Sq, d_model).astype(cd)
        qkv = pallas_linear(x, w_qkv, out_dtype=cd).reshape(B, Sq, 3 * d_model)
        # Flash kernel reads q/k/v straight from the packed QKV activation via
        # last-dim block offsets (no XLA slice copies).
        context = pallas_flash_sdpa(
            qkv, qkv, qkv, mask_arr, mask_mode, num_heads,
            d_model=d_model, seq_q=Sq, seq_k=Sq, batch=B,
            causal=causal, out_dtype=cd, block_q=block_q, block_k=block_k,
            q_col0=0, k_col0=d_model, v_col0=2 * d_model,
        )
    else:
        wq = (params["w_query_t"] * scale).astype(cd)
        wk = params["w_key_t"].astype(cd)
        wv = params["w_value_t"].astype(cd)
        q_proj = pallas_linear(query.reshape(B * Sq, d_model).astype(cd), wq,
                               out_dtype=cd).reshape(B, Sq, d_model)
        k_proj = pallas_linear(key.reshape(B * Sk, d_model).astype(cd), wk,
                               out_dtype=cd).reshape(B, Sk, d_model)
        v_proj = pallas_linear(value.reshape(B * Sk, d_model).astype(cd), wv,
                               out_dtype=cd).reshape(B, Sk, d_model)
        context = pallas_flash_sdpa(
            q_proj, k_proj, v_proj, mask_arr, mask_mode, num_heads,
            d_model=d_model, seq_q=Sq, seq_k=Sk, batch=B,
            causal=causal, out_dtype=cd, block_q=block_q, block_k=block_k,
        )

    wo = params["final_linear_t"].astype(cd)
    out = pallas_linear(context.reshape(B * Sq, d_model), wo, out_dtype=out_dtype)
    return out.reshape(B, Sq, d_model)


# --------------------------------------------------------------------------
# Pure-JAX reference (mirror of the PyTorch module) for correctness checks.
# --------------------------------------------------------------------------
def reference_mha(params, query, key, value, num_heads, mask=None):
    B, Sq, d_model = query.shape
    Sk = key.shape[1]
    d_k = d_model // num_heads
    q = query @ params["w_query_t"]
    k = key @ params["w_key_t"]
    v = value @ params["w_value_t"]
    qh = q.reshape(B, Sq, num_heads, d_k).transpose(0, 2, 1, 3)
    kh = k.reshape(B, Sk, num_heads, d_k).transpose(0, 2, 1, 3)
    vh = v.reshape(B, Sk, num_heads, d_k).transpose(0, 2, 1, 3)
    scores = jnp.einsum("bhqd,bhkd->bhqk", qh, kh) / jnp.sqrt(jnp.float32(d_k))
    if mask is not None:
        m = jnp.asarray(mask, dtype=jnp.float32)
        if m.ndim == 2 and m.shape == (B, Sk):
            m = m[:, None, None, :]
        elif m.ndim == 2:
            m = m[None, None, :, :]
        elif m.ndim == 3:
            m = m[:, None, :, :]
        scores = jnp.where(m == 0, -1.0e10, scores)
    probs = jax.nn.softmax(scores, axis=-1)
    ctx = jnp.einsum("bhqk,bhkd->bhqd", probs, vh)
    ctx = ctx.transpose(0, 2, 1, 3).reshape(B, Sq, d_model)
    return ctx @ params["final_linear_t"]


if __name__ == "__main__":
    # Shapes chosen so the tiled/flash paths are exercised: 2 q-tiles, 2 k-tiles,
    # d_k = 128 (packed) and d_k = 64 (two heads per 128-lane block).
    batch, seq_len, d_model = 2, 512, 256

    root = jax.random.PRNGKey(0)
    k_params, k_x, k_k, k_v = jax.random.split(root, 4)

    params = init_mha_params(k_params, d_model)
    x = jax.random.normal(k_x, (batch, seq_len, d_model), dtype=jnp.float32)
    key_in = jax.random.normal(k_k, (batch, seq_len, d_model), dtype=jnp.float32)
    val_in = jax.random.normal(k_v, (batch, seq_len, d_model), dtype=jnp.float32)

    causal_mask = jnp.tril(jnp.ones((seq_len, seq_len), dtype=jnp.float32))
    pad_mask = jnp.ones((batch, seq_len), dtype=jnp.float32)
    pad_mask = pad_mask.at[:, 3 * seq_len // 4:].set(0.0)

    H = 2  # d_k = 128

    # 1) f32 compute, no mask, fused self-attention (QKV fused, weight-resident linears)
    out = multi_headed_attention(params, x, x, x, H, compute_dtype=jnp.float32)
    jax.block_until_ready(out)
    ref = reference_mha(params, x, x, x, H)
    assert out.shape == (batch, seq_len, d_model)
    assert jnp.allclose(out, ref, atol=5e-3, rtol=5e-3)

    # 2) f32 compute, in-kernel causal mask + causal tile skip (no mask operand)
    out_c = multi_headed_attention(params, x, x, x, H, causal=True,
                                   compute_dtype=jnp.float32)
    jax.block_until_ready(out_c)
    ref_c = reference_mha(params, x, x, x, H, mask=causal_mask)
    assert jnp.allclose(out_c, ref_c, atol=5e-3, rtol=5e-3)

    # 3) f32 compute, explicit (Sq, Sk) look-ahead mask, distinct q/k/v (unfused path)
    out_m = multi_headed_attention(params, x, key_in, val_in, H, mask=causal_mask,
                                   compute_dtype=jnp.float32)
    jax.block_until_ready(out_m)
    ref_m = reference_mha(params, x, key_in, val_in, H, mask=causal_mask)
    assert jnp.allclose(out_m, ref_m, atol=5e-3, rtol=5e-3)

    # 4) f32 compute, (B, Sk) padding mask streamed as (B, 1, Sk) int8
    out_p = multi_headed_attention(params, x, x, x, H, mask=pad_mask,
                                   compute_dtype=jnp.float32)
    jax.block_until_ready(out_p)
    ref_p = reference_mha(params, x, x, x, H, mask=pad_mask)
    assert jnp.allclose(out_p, ref_p, atol=5e-3, rtol=5e-3)

    # 5) f32 compute, num_heads=4 -> d_k=64: two heads packed per 128-lane block
    out_h4 = multi_headed_attention(params, x, x, x, 4, causal=True,
                                    compute_dtype=jnp.float32)
    jax.block_until_ready(out_h4)
    ref_h4 = reference_mha(params, x, x, x, 4, mask=causal_mask)
    assert jnp.allclose(out_h4, ref_h4, atol=5e-3, rtol=5e-3)

    # 6) default bf16 MXU operands (f32 accumulation), causal; looser tolerance
    out_bf = multi_headed_attention(params, x, x, x, H, causal=True)
    jax.block_until_ready(out_bf)
    assert jnp.allclose(out_bf.astype(jnp.float32), ref_c, atol=1e-1, rtol=1e-1)

    print("KERNEL_OK")
</pallas_src>

<mosaic_0001>
module attributes {stable_mosaic.version = 11 : i64} {
  func.func @_linear_resident_kernel(%arg0: i32, %arg1: memref<512x256xf32, #tpu.memory_space<vmem>>, %arg2: memref<256x768xf32, #tpu.memory_space<vmem>>, %arg3: memref<512x768xf32, #tpu.memory_space<vmem>>) attributes {dimension_semantics = [#tpu.dimension_semantics<parallel>], iteration_bounds = array<i64: 2>, scalar_prefetch = 0 : i64, scratch_operands = 0 : i64, tpu.core_type = #tpu.core_type<tc>, window_params = [{transform_indices = @transform_0, window_bounds = array<i64: 512, 256>}, {pipeline_mode = #tpu.pipeline_mode<synchronous>, transform_indices = @transform_1, window_bounds = array<i64: 256, 768>}, {transform_indices = @transform_2, window_bounds = array<i64: 512, 768>}]} {
    %c0 = arith.constant 0 : index
    %c0_0 = arith.constant 0 : index
    %0 = vector.load %arg1[%c0, %c0_0] : memref<512x256xf32, #tpu.memory_space<vmem>>, vector<512x256xf32>
    %c0_1 = arith.constant 0 : index
    %c0_2 = arith.constant 0 : index
    %1 = vector.load %arg2[%c0_1, %c0_2] : memref<256x768xf32, #tpu.memory_space<vmem>>, vector<256x768xf32>
    %cst = arith.constant dense<0.000000e+00> : vector<512x768xf32>
    %2 = tpu.matmul %0, %1, %cst {dimension_numbers = #tpu.dot_dimension_numbers<[1], [0], [0], [1], [0, 0, 1, 1], [], []>} : vector<512x256xf32>, vector<256x768xf32>, vector<512x768xf32> -> vector<512x768xf32>
    %c0_3 = arith.constant 0 : index
    %c0_4 = arith.constant 0 : index
    %3 = vector.load %arg3[%c0_3, %c0_4] : memref<512x768xf32, #tpu.memory_space<vmem>>, vector<512x768xf32>
    tpu.vector_store %arg3[%c0_3, %c0_4], %2 {strides = array<i32>} : memref<512x768xf32, #tpu.memory_space<vmem>>, vector<512x768xf32>,
    return
  }
  func.func @transform_0(%arg0: i32) -> (i32, i32) {
    %c0_i32 = arith.constant 0 : i32
    %c0_i32_0 = arith.constant 0 : i32
    return %arg0, %c0_i32 : i32, i32
  }
  func.func @transform_1(%arg0: i32) -> (i32, i32) {
    %c0_i32 = arith.constant 0 : i32
    %c0_i32_0 = arith.constant 0 : i32
    %c0_i32_1 = arith.constant 0 : i32
    return %c0_i32, %c0_i32_0 : i32, i32
  }
  func.func @transform_2(%arg0: i32) -> (i32, i32) {
    %c0_i32 = arith.constant 0 : i32
    %c0_i32_0 = arith.constant 0 : i32
    return %arg0, %c0_i32 : i32, i32
  }
}

</mosaic_0001>

<llo_original>
// kernel: tpu_custom_call.1
$region0: #{tpu_custom_call.1}
  #allocation0 [shape = 'u32[]', space=smem, size = 0x4, offset = 0x4, fixed_abs, tag = 'smem constant byte address 0x4 - core index']
  #allocation1 [shape = 'u32[144,128]{1,0:T(1,128)}', space=vmem, size = 0x12000, scoped, tag = 'internal scratch']
  %s0 = inlined_call_operand.hbm [shape: f32[1024,256], index: 0, kind: input, shape index: {}]
  %s1 = inlined_call_operand.hbm [shape: f32[256,768], index: 1, kind: input, shape index: {}]
  %s2 = inlined_call_operand.hbm [shape: f32[1024,768], index: 2, kind: output, shape index: {}]
  %s3 = sld [smem:[#allocation0]]
  $region49: #{tpu_custom_call.1} parent=0
    _
  %s5 = ssub.s32 1, %s3
  %s6 = scalar_select 0, %s5, %s3
  $region1: #{tpu_custom_call.1} parent=0
    #allocation2 [shape = 'u8[1048576]{0}', space=vmem, size = 0x100000, scoped, tag = 'input window, operand 0']
    #allocation3 [shape = 's32[2]{0}', space=sflag, size = 0x8, scoped, tag = 'scoped memory for tpu_custom_call.1']
    #allocation4 [shape = 's32[2]{0}', space=sflag, size = 0x8, scoped, tag = 'scoped memory for tpu_custom_call.1']
    #allocation5 [shape = 'u8[786432]{0}', space=vmem, size = 0xc0000, scoped, tag = 'input window, operand 1, single buffered']
    #allocation6 [shape = 's32[1]{0}', space=sflag, size = 0x4, scoped, tag = 'scoped memory for tpu_custom_call.1']
    #allocation7 [shape = 'u8[3145728]{0}', space=vmem, size = 0x300000, scoped, tag = 'output window, operand 0']
    %7 = vsyncpa [#allocation3], 0
    %s8 = scalar_lea.sflag [#allocation3], 1
    %9 = vsyncpa %s8, 0
    %10 = vsyncpa [#allocation6], 0
    %11 = vsyncpa [#allocation4], 0
    %s12 = scalar_lea.sflag [#allocation4], 1
    %13 = vsyncpa %s12, 0
    loop: start=0, step=1, limit=4
    $region2: #{tpu_custom_call.1} parent=1 // loop_pre_header
      _
    $region3: #{tpu_custom_call.1} parent=1 // loop_header
      %s15 = sphi 0, %s19
      %p16 = scmp.ge.s32.totalorder %s15, 4
      %s25 = sphi 0, %s27
      %s28 = sphi 0, %s25
      %s29 = sphi 0, %s28
      %s45 = sphi 0, %s29
      %s49 = sphi 0, %s49
      %s51 = sphi 0, %s49
      %s52 = sphi 0, %s51
      %s66 = sphi 0, %s52
      %s72 = sphi 0, %s74
      %s75 = sphi 0, %s72
      %s76 = sphi 0, %s75
      %s92 = sphi 0, %s76
    $region4: #{tpu_custom_call.1} parent=1 // loop_header_branch
      %18 = sbr.rel (%p16) target = $region8
    $region5: #{tpu_custom_call.1} parent=1 // loop_body
      %s20 = ssub.s32 %s15, 1
      %s21 = ssub.s32 %s15, 2
      %s22 = sadd.s32 %s15, 1
      %s23 = ssub.s32 %s15, %s22
      %p24 = scmp.eq.s32.totalorder %s23, 0
      %s26 = sadd.s32 %s25, 1
      %s27 = scalar_select %p24, %s25, %s26
      %p30 = pneg %p24
      %p31 = scmp.eq.s32.totalorder %s15, 1
      %p32 = por %p30, %p31
      %p33 = scmp.ne.s32.totalorder %s25, %s28
      %p34 = scmp.eq.s32.totalorder %s15, 0
      %p35 = por %p33, %p34
      %p36 = scmp.ne.s32.totalorder %s25, %s28
      %p37 = scmp.eq.s32.totalorder %s20, 1
      %p38 = por %p36, %p37
      %p39 = scmp.ne.s32.totalorder %s28, %s29
      %p40 = scmp.eq.s32.totalorder %s20, 0
      %p41 = por %p39, %p40
      %p42 = scmp.ne.s32.totalorder %s28, %s29
      %p43 = scmp.eq.s32.totalorder %s21, 1
      %p44 = por %p42, %p43
      %p46 = scmp.ne.s32.totalorder %s29, %s45
      %p47 = scmp.eq.s32.totalorder %s21, 0
      %p48 = por %p46, %p47
      %s50 = sadd.s32 %s49, 1
      %p53 = scmp.eq.s32.totalorder %s15, 1
      %p54 = scmp.ne.s32.totalorder %s49, %s51
      %p55 = scmp.eq.s32.totalorder %s15, 0
      %p56 = por %p54, %p55
      %p57 = scmp.ne.s32.totalorder %s49, %s51
      %p58 = scmp.eq.s32.totalorder %s20, 1
      %p59 = por %p57, %p58
      %p60 = scmp.ne.s32.totalorder %s51, %s52
      %p61 = scmp.eq.s32.totalorder %s20, 0
      %p62 = por %p60, %p61
      %p63 = scmp.ne.s32.totalorder %s51, %s52
      %p64 = scmp.eq.s32.totalorder %s21, 1
      %p65 = por %p63, %p64
      %p67 = scmp.ne.s32.totalorder %s52, %s66
      %p68 = scmp.eq.s32.totalorder %s21, 0
      %p69 = por %p67, %p68
      %s70 = ssub.s32 %s15, %s22
      %p71 = scmp.eq.s32.totalorder %s70, 0
      %s73 = sadd.s32 %s72, 1
      %s74 = scalar_select %p71, %s72, %s73
      %p77 = pneg %p71
      %p78 = scmp.eq.s32.totalorder %s15, 1
      %p79 = por %p77, %p78
      %p80 = scmp.ne.s32.totalorder %s72, %s75
      %p81 = scmp.eq.s32.totalorder %s15, 0
      %p82 = por %p80, %p81
      %p83 = scmp.ne.s32.totalorder %s72, %s75
      %p84 = scmp.eq.s32.totalorder %s20, 1
      %p85 = por %p83, %p84
      %p86 = scmp.ne.s32.totalorder %s75, %s76
      %p87 = scmp.eq.s32.totalorder %s20, 0
      %p88 = por %p86, %p87
      %p89 = scmp.ne.s32.totalorder %s75, %s76
      %p90 = scmp.eq.s32.totalorder %s21, 1
      %p91 = por %p89, %p90
      %p93 = scmp.ne.s32.totalorder %s76, %s92
      %p94 = scmp.eq.s32.totalorder %s21, 0
      %p95 = por %p93, %p94
      %p96 = scmp.le.s32.totalorder 1, %s15
      %p97 = scmp.lt.s32.totalorder %s15, 3
      %p98 = pnand %p96, %p97
      %p99 = pneg %p98
      // Predicated region
      $region9: #{tpu_custom_call.1} parent=5 // pred_check
        _
      $region10: #{tpu_custom_call.1} parent=5 // pred_check_branch
        %101 = sbr.rel (%p98) target = $region12
      $region11: #{tpu_custom_call.1} parent=5 // pred_region
        %s102 = ssub.s32 %s15, 1
        // Predicated region
        $region13: #{tpu_custom_call.1} parent=11 // pred_check
          %p103 = pneg %p62
        $region14: #{tpu_custom_call.1} parent=11 // pred_check_branch
          %105 = sbr.rel (%p103) target = $region16
        $region15: #{tpu_custom_call.1} parent=11 // pred_region
          %s107 = ssub.s32 24576, 24576
          %108 = vsyncadd [#allocation6], %s107
          %s109 = sshll.u32 [#allocation5], 4
          %s110 = int_to_ptr.vmem [resolvable:$true] %s109
          %115 = dma.hbm_to_vmem [thread:$0]  %s1, 24576, %s110, [#allocation6], 768, 768, 48
        $region16: #{tpu_custom_call.1} parent=11 // pred_fallthru
          _
      $region12: #{tpu_custom_call.1} parent=5 // pred_fallthru
        _
      %p116 = scmp.lt.s32.totalorder %s15, 2
      // Predicated region
      $region17: #{tpu_custom_call.1} parent=5 // pred_check
        %p117 = pneg %p116
      $region18: #{tpu_custom_call.1} parent=5 // pred_check_branch
        %119 = sbr.rel (%p117) target = $region20
      $region19: #{tpu_custom_call.1} parent=5 // pred_region
        // Predicated region
        $region21: #{tpu_custom_call.1} parent=19 // pred_check
          %p120 = pneg %p35
        $region22: #{tpu_custom_call.1} parent=19 // pred_check_branch
          %122 = sbr.rel (%p120) target = $region24
        $region23: #{tpu_custom_call.1} parent=19 // pred_region
          %s123 = sand.u32 %s25, 1
          %s124 = scalar_lea.sflag [#allocation3], %s123
          %s125 = sand.u32 %s25, 1
          %s126 = smul.addr %s125, 1024
          %s127 = scalar_lea.vmem [#allocation2], %s126
          %s128 = smul.u32 64, %s15
          %s130 = ssub.s32 16384, 16384
          %131 = vsyncadd %s124, %s130
          %s132 = smul.addr %s128, 2
          %s133 = smul.addr %s132, 128
          %s134 = scalar_lea.hbm %s0, %s133
          %s135 = sshll.u32 %s127, 4
          %s136 = int_to_ptr.vmem [resolvable:$true] %s135
          %141 = dma.hbm_to_vmem [thread:$0]  %s134, 16384, %s136, %s124, 256, 256, 16
        $region24: #{tpu_custom_call.1} parent=19 // pred_fallthru
          _
      $region20: #{tpu_custom_call.1} parent=5 // pred_fallthru
        _
      %p142 = scmp.le.s32.totalorder 1, %s15
      %p143 = scmp.lt.s32.totalorder %s15, 3
      %p144 = pnand %p142, %p143
      %p145 = pneg %p144
      // Predicated region
      $region25: #{tpu_custom_call.1} parent=5 // pred_check
        _
      $region26: #{tpu_custom_call.1} parent=5 // pred_check_branch
        %147 = sbr.rel (%p144) target = $region28
      $region27: #{tpu_custom_call.1} parent=5 // pred_region
        %s148 = ssub.s32 %s15, 1
        %s149 = sand.u32 %s28, 1
        %s150 = scalar_lea.sflag [#allocation3], %s149
        %s151 = sand.u32 %s28, 1
        %s152 = smul.addr %s151, 1024
        %s153 = scalar_lea.vmem [#allocation2], %s152
        // Predicated region
        $region29: #{tpu_custom_call.1} parent=27 // pred_check
          %p154 = pneg %p41
        $region30: #{tpu_custom_call.1} parent=27 // pred_check_branch
          %156 = sbr.rel (%p154) target = $region32
        $region31: #{tpu_custom_call.1} parent=27 // pred_region
          %157 = dma.done %s150, 16384
        $region32: #{tpu_custom_call.1} parent=27 // pred_fallthru
          _
        // Predicated region
        $region33: #{tpu_custom_call.1} parent=27 // pred_check
          %p158 = pneg %p62
        $region34: #{tpu_custom_call.1} parent=27 // pred_check_branch
          %160 = sbr.rel (%p158) target = $region36
        $region35: #{tpu_custom_call.1} parent=27 // pred_region
          %161 = dma.done [#allocation6], 24576
        $region36: #{tpu_custom_call.1} parent=27 // pred_fallthru
          _
        %s162 = sand.u32 %s28, 1
        %s163 = scalar_lea.sflag [#allocation3], %s162
        %s164 = sand.u32 %s28, 1
        %s165 = smul.addr %s164, 1024
        %s166 = scalar_lea.vmem [#allocation2], %s165
        %p167 = pneg %p41
        %p168 = pneg %p38
        %p169 = pneg %p62
        %p170 = pneg %p59
        %p171 = pneg %p88
        %p172 = pneg %p85
        %s173 = sand.u32 %s75, 1
        %s174 = scalar_lea.sflag [#allocation4], %s173
        %s175 = sand.u32 %s75, 1
        %s176 = smul.addr %s175, 3072
        %s177 = scalar_lea.vmem [#allocation7], %s176
        %s178 = smul.u32 64, %s20
        %s179 = smul.u32 64, %s20
        %v180 = vld [vmem:[%s153] sm:$0xff]
        %v181 = vld [vmem:[%s153 + $0x8] sm:$0xff]
        %v182 = vld [vmem:[%s153 + $0x10] sm:$0xff]
        %v183 = vld [vmem:[%s153 + $0x18] sm:$0xff]
        %v184 = vld [vmem:[%s153 + $0x20] sm:$0xff]
        %v185 = vld [vmem:[%s153 + $0x28] sm:$0xff]
        %v186 = vld [vmem:[%s153 + $0x30] sm:$0xff]
        %v187 = vld [vmem:[%s153 + $0x38] sm:$0xff]
        %v188 = vld [vmem:[%s153 + $0x40] sm:$0xff]
        %v189 = vld [vmem:[%s153 + $0x48] sm:$0xff]
        %v190 = vld [vmem:[%s153 + $0x50] sm:$0xff]
        %v191 = vld [vmem:[%s153 + $0x58] sm:$0xff]
        %v192 = vld [vmem:[%s153 + $0x60] sm:$0xff]
        %v193 = vld [vmem:[%s153 + $0x68] sm:$0xff]
        %v194 = vld [vmem:[%s153 + $0x70] sm:$0xff]
        %v195 = vld [vmem:[%s153 + $0x78] sm:$0xff]
        %v196 = vld [vmem:[%s153 + $0x80] sm:$0xff]
        %v197 = vld [vmem:[%s153 + $0x88] sm:$0xff]
        %v198 = vld [vmem:[%s153 + $0x90] sm:$0xff]
        %v199 = vld [vmem:[%s153 + $0x98] sm:$0xff]
        %v200 = vld [vmem:[%s153 + $0xa0] sm:$0xff]
        %v201 = vld [vmem:[%s153 + $0xa8] sm:$0xff]
        %v202 = vld [vmem:[%s153 + $0xb0] sm:$0xff]
        %v203 = vld [vmem:[%s153 + $0xb8] sm:$0xff]
        %v204 = vld [vmem:[%s153 + $0xc0] sm:$0xff]
        %v205 = vld [vmem:[%s153 + $0xc8] sm:$0xff]
        %v206 = vld [vmem:[%s153 + $0xd0] sm:$0xff]
        %v207 = vld [vmem:[%s153 + $0xd8] sm:$0xff]
        %v208 = vld [vmem:[%s153 + $0xe0] sm:$0xff]
        %v209 = vld [vmem:[%s153 + $0xe8] sm:$0xff]
        %v210 = vld [vmem:[%s153 + $0xf0] sm:$0xff]
        %v211 = vld [vmem:[%s153 + $0xf8] sm:$0xff]
        %v212 = vld [vmem:[%s153 + $0x100] sm:$0xff]
        %v213 = vld [vmem:[%s153 + $0x108] sm:$0xff]
        %v214 = vld [vmem:[%s153 + $0x110] sm:$0xff]
        %v215 = vld [vmem:[%s153 + $0x118] sm:$0xff]
        %v216 = vld [vmem:[%s153 + $0x120] sm:$0xff]
        %v217 = vld [vmem:[%s153 + $0x128] sm:$0xff]
        %v218 = vld [vmem:[%s153 + $0x130] sm:$0xff]
        %v219 = vld [vmem:[%s153 + $0x138] sm:$0xff]
        %v220 = vld [vmem:[%s153 + $0x140] sm:$0xff]
        %v221 = vld [vmem:[%s153 + $0x148] sm:$0xff]
        %v222 = vld [vmem:[%s153 + $0x150] sm:$0xff]
        %v223 = vld [vmem:[%s153 + $0x158] sm:$0xff]
        %v224 = vld [vmem:[%s153 + $0x160] sm:$0xff]
        %v225 = vld [vmem:[%s153 + $0x168] sm:$0xff]
        %v226 = vld [vmem:[%s153 + $0x170] sm:$0xff]
        %v227 = vld [vmem:[%s153 + $0x178] sm:$0xff]
        %v228 = vld [vmem:[%s153 + $0x180] sm:$0xff]
        %v229 = vld [vmem:[%s153 + $0x188] sm:$0xff]
        %v230 = vld [vmem:[%s153 + $0x190] sm:$0xff]
        %v231 = vld [vmem:[%s153 + $0x198] sm:$0xff]
        %v232 = vld [vmem:[%s153 + $0x1a0] sm:$0xff]
        %v233 = vld [vmem:[%s153 + $0x1a8] sm:$0xff]
        %v234 = vld [vmem:[%s153 + $0x1b0] sm:$0xff]
        %v235 = vld [vmem:[%s153 + $0x1b8] sm:$0xff]
        %v236 = vld [vmem:[%s153 + $0x1c0] sm:$0xff]
        %v237 = vld [vmem:[%s153 + $0x1c8] sm:$0xff]
        %v238 = vld [vmem:[%s153 + $0x1d0] sm:$0xff]
        %v239 = vld [vmem:[%s153 + $0x1d8] sm:$0xff]
        %v240 = vld [vmem:[%s153 + $0x1e0] sm:$0xff]
        %v241 = vld [vmem:[%s153 + $0x1e8] sm:$0xff]
        %v242 = vld [vmem:[%s153 + $0x1f0] sm:$0xff]
        %v243 = vld [vmem:[%s153 + $0x1f8] sm:$0xff]
        %v244 = vld [vmem:[%s153 + $0x200] sm:$0xff]
        %v245 = vld [vmem:[%s153 + $0x208] sm:$0xff]
        %v246 = vld [vmem:[%s153 + $0x210] sm:$0xff]
        %v247 = vld [vmem:[%s153 + $0x218] sm:$0xff]
        %v248 = vld [vmem:[%s153 + $0x220] sm:$0xff]
        %v249 = vld [vmem:[%s153 + $0x228] sm:$0xff]
        %v250 = vld [vmem:[%s153 + $0x230] sm:$0xff]
        %v251 = vld [vmem:[%s153 + $0x238] sm:$0xff]
        %v252 = vld [vmem:[%s153 + $0x240] sm:$0xff]
        %v253 = vld [vmem:[%s153 + $0x248] sm:$0xff]
        %v254 = vld [vmem:[%s153 + $0x250] sm:$0xff]
        %v255 = vld [vmem:[%s153 + $0x258] sm:$0xff]
        %v256 = vld [vmem:[%s153 + $0x260] sm:$0xff]
        %v257 = vld [vmem:[%s153 + $0x268] sm:$0xff]
        %v258 = vld [vmem:[%s153 + $0x270] sm:$0xff]
        %v259 = vld [vmem:[%s153 + $0x278] sm:$0xff]
        %v260 = vld [vmem:[%s153 + $0x280] sm:$0xff]
        %v261 = vld [vmem:[%s153 + $0x288] sm:$0xff]
        %v262 = vld [vmem:[%s153 + $0x290] sm:$0xff]
        %v263 = vld [vmem:[%s153 + $0x298] sm:$0xff]
        %v264 = vld [vmem:[%s153 + $0x2a0] sm:$0xff]
        %v265 = vld [vmem:[%s153 + $0x2a8] sm:$0xff]
        %v266 = vld [vmem:[%s153 + $0x2b0] sm:$0xff]
        %v267 = vld [vmem:[%s153 + $0x2b8] sm:$0xff]
        %v268 = vld [vmem:[%s153 + $0x2c0] sm:$0xff]
        %v269 = vld [vmem:[%s153 + $0x2c8] sm:$0xff]
        %v270 = vld [vmem:[%s153 + $0x2d0] sm:$0xff]
        %v271 = vld [vmem:[%s153 + $0x2d8] sm:$0xff]
        %v272 = vld [vmem:[%s153 + $0x2e0] sm:$0xff]
        %v273 = vld [vmem:[%s153 + $0x2e8] sm:$0xff]
        %v274 = vld [vmem:[%s153 + $0x2f0] sm:$0xff]
        %v275 = vld [vmem:[%s153 + $0x2f8] sm:$0xff]
        %v276 = vld [vmem:[%s153 + $0x300] sm:$0xff]
        %v277 = vld [vmem:[%s153 + $0x308] sm:$0xff]
        %v278 = vld [vmem:[%s153 + $0x310] sm:$0xff]
        %v279 = vld [vmem:[%s153 + $0x318] sm:$0xff]
        %v280 = vld [vmem:[%s153 + $0x320] sm:$0xff]
        %v281 = vld [vmem:[%s153 + $0x328] sm:$0xff]
        %v282 = vld [vmem:[%s153 + $0x330] sm:$0xff]
        %v283 = vld [vmem:[%s153 + $0x338] sm:$0xff]
        %v284 = vld [vmem:[%s153 + $0x340] sm:$0xff]
        %v285 = vld [vmem:[%s153 + $0x348] sm:$0xff]
        %v286 = vld [vmem:[%s153 + $0x350] sm:$0xff]
        %v287 = vld [vmem:[%s153 + $0x358] sm:$0xff]
        %v288 = vld [vmem:[%s153 + $0x360] sm:$0xff]
        %v289 = vld [vmem:[%s153 + $0x368] sm:$0xff]
        %v290 = vld [vmem:[%s153 + $0x370] sm:$0xff]
        %v291 = vld [vmem:[%s153 + $0x378] sm:$0xff]
        %v292 = vld [vmem:[%s153 + $0x380] sm:$0xff]
        %v293 = vld [vmem:[%s153 + $0x388] sm:$0xff]
        %v294 = vld [vmem:[%s153 + $0x390] sm:$0xff]
        %v295 = vld [vmem:[%s153 + $0x398] sm:$0xff]
        %v296 = vld [vmem:[%s153 + $0x3a0] sm:$0xff]
        %v297 = vld [vmem:[%s153 + $0x3a8] sm:$0xff]
        %v298 = vld [vmem:[%s153 + $0x3b0] sm:$0xff]
        %v299 = vld [vmem:[%s153 + $0x3b8] sm:$0xff]
        %v300 = vld [vmem:[%s153 + $0x3c0] sm:$0xff]
        %v301 = vld [vmem:[%s153 + $0x3c8] sm:$0xff]
        %v302 = vld [vmem:[%s153 + $0x3d0] sm:$0xff]
        %v303 = vld [vmem:[%s153 + $0x3d8] sm:$0xff]
        %v304 = vld [vmem:[%s153 + $0x3e0] sm:$0xff]
        %v305 = vld [vmem:[%s153 + $0x3e8] sm:$0xff]
        %v306 = vld [vmem:[%s153 + $0x3f0] sm:$0xff]
        %v307 = vld [vmem:[%s153 + $0x3f8] sm:$0xff]
        %v308 = vld [vmem:[#allocation5] sm:$0xff]
        %v309 = vld [vmem:[#allocation5 + $0x8] sm:$0xff]
        %v310 = vld [vmem:[#allocation5 + $0x10] sm:$0xff]
        %v311 = vld [vmem:[#allocation5 + $0x18] sm:$0xff]
        %v312 = vld [vmem:[#allocation5 + $0x20] sm:$0xff]
        %v313 = vld [vmem:[#allocation5 + $0x28] sm:$0xff]
        %v314 = vld [vmem:[#allocation5 + $0x30] sm:$0xff]
        %v315 = vld [vmem:[#allocation5 + $0x38] sm:$0xff]
        %v316 = vld [vmem:[#allocation5 + $0x40] sm:$0xff]
        %v317 = vld [vmem:[#allocation5 + $0x48] sm:$0xff]
        %v318 = vld [vmem:[#allocation5 + $0x50] sm:$0xff]
        %v319 = vld [vmem:[#allocation5 + $0x58] sm:$0xff]
        %v320 = vld [vmem:[#allocation5 + $0x60] sm:$0xff]
        %v321 = vld [vmem:[#allocation5 + $0x68] sm:$0xff]
        %v322 = vld [vmem:[#allocation5 + $0x70] sm:$0xff]
        %v323 = vld [vmem:[#allocation5 + $0x78] sm:$0xff]
        %v324 = vld [vmem:[#allocation5 + $0x80] sm:$0xff]
        %v325 = vld [vmem:[#allocation5 + $0x88] sm:$0xff]
        %v326 = vld [vmem:[#allocation5 + $0x90] sm:$0xff]
        %v327 = vld [vmem:[#allocation5 + $0x98] sm:$0xff]
        %v328 = vld [vmem:[#allocation5 + $0xa0] sm:$0xff]
        %v329 = vld [vmem:[#allocation5 + $0xa8] sm:$0xff]
        %v330 = vld [vmem:[#allocation5 + $0xb0] sm:$0xff]
        %v331 = vld [vmem:[#allocation5 + $0xb8] sm:$0xff]
        %v332 = vld [vmem:[#allocation5 + $0xc0] sm:$0xff]
        %v333 = vld [vmem:[#allocation5 + $0xc8] sm:$0xff]
        %v334 = vld [vmem:[#allocation5 + $0xd0] sm:$0xff]
        %v335 = vld [vmem:[#allocation5 + $0xd8] sm:$0xff]
        %v336 = vld [vmem:[#allocation5 + $0xe0] sm:$0xff]
        %v337 = vld [vmem:[#allocation5 + $0xe8] sm:$0xff]
        %v338 = vld [vmem:[#allocation5 + $0xf0] sm:$0xff]
        %v339 = vld [vmem:[#allocation5 + $0xf8] sm:$0xff]
        %v340 = vld [vmem:[#allocation5 + $0x100] sm:$0xff]
        %v341 = vld [vmem:[#allocation5 + $0x108] sm:$0xff]
        %v342 = vld [vmem:[#allocation5 + $0x110] sm:$0xff]
        %v343 = vld [vmem:[#allocation5 + $0x118] sm:$0xff]
        %v344 = vld [vmem:[#allocation5 + $0x120] sm:$0xff]
        %v345 = vld [vmem:[#allocation5 + $0x128] sm:$0xff]
        %v346 = vld [vmem:[#allocation5 + $0x130] sm:$0xff]
        %v347 = vld [vmem:[#allocation5 + $0x138] sm:$0xff]
        %v348 = vld [vmem:[#allocation5 + $0x140] sm:$0xff]
        %v349 = vld [vmem:[#allocation5 + $0x148] sm:$0xff]
        %v350 = vld [vmem:[#allocation5 + $0x150] sm:$0xff]
        %v351 = vld [vmem:[#allocation5 + $0x158] sm:$0xff]
        %v352 = vld [vmem:[#allocation5 + $0x160] sm:$0xff]
        %v353 = vld [vmem:[#allocation5 + $0x168] sm:$0xff]
        %v354 = vld [vmem:[#allocation5 + $0x170] sm:$0xff]
        %v355 = vld [vmem:[#allocation5 + $0x178] sm:$0xff]
        %v356 = vld [vmem:[#allocation5 + $0x180] sm:$0xff]
        %v357 = vld [vmem:[#allocation5 + $0x188] sm:$0xff]
        %v358 = vld [vmem:[#allocation5 + $0x190] sm:$0xff]
        %v359 = vld [vmem:[#allocation5 + $0x198] sm:$0xff]
        %v360 = vld [vmem:[#allocation5 + $0x1a0] sm:$0xff]
        %v361 = vld [vmem:[#allocation5 + $0x1a8] sm:$0xff]
        %v362 = vld [vmem:[#allocation5 + $0x1b0] sm:$0xff]
        %v363 = vld [vmem:[#allocation5 + $0x1b8] sm:$0xff]
        %v364 = vld [vmem:[#allocation5 + $0x1c0] sm:$0xff]
        %v365 = vld [vmem:[#allocation5 + $0x1c8] sm:$0xff]
        %v366 = vld [vmem:[#allocation5 + $0x1d0] sm:$0xff]
        %v367 = vld [vmem:[#allocation5 + $0x1d8] sm:$0xff]
        %v368 = vld [vmem:[#allocation5 + $0x1e0] sm:$0xff]
        %v369 = vld [vmem:[#allocation5 + $0x1e8] sm:$0xff]
        %v370 = vld [vmem:[#allocation5 + $0x1f0] sm:$0xff]
        %v371 = vld [vmem:[#allocation5 + $0x1f8] sm:$0xff]
        %v372 = vld [vmem:[#allocation5 + $0x200] sm:$0xff]
        %v373 = vld [vmem:[#allocation5 + $0x208] sm:$0xff]
        %v374 = vld [vmem:[#allocation5 + $0x210] sm:$0xff]
        %v375 = vld [vmem:[#allocation5 + $0x218] sm:$0xff]
        %v376 = vld [vmem:[#allocation5 + $0x220] sm:$0xff]
        %v377 = vld [vmem:[#allocation5 + $0x228] sm:$0xff]
        %v378 = vld [vmem:[#allocation5 + $0x230] sm:$0xff]
        %v379 = vld [vmem:[#allocation5 + $0x238] sm:$0xff]
        %v380 = vld [vmem:[#allocation5 + $0x240] sm:$0xff]
        %v381 = vld [vmem:[#allocation5 + $0x248] sm:$0xff]
        %v382 = vld [vmem:[#allocation5 + $0x250] sm:$0xff]
        %v383 = vld [vmem:[#allocation5 + $0x258] sm:$0xff]
        %v384 = vld [vmem:[#allocation5 + $0x260] sm:$0xff]
        %v385 = vld [vmem:[#allocation5 + $0x268] sm:$0xff]
        %v386 = vld [vmem:[#allocation5 + $0x270] sm:$0xff]
        %v387 = vld [vmem:[#allocation5 + $0x278] sm:$0xff]
        %v388 = vld [vmem:[#allocation5 + $0x280] sm:$0xff]
        %v389 = vld [vmem:[#allocation5 + $0x288] sm:$0xff]
        %v390 = vld [vmem:[#allocation5 + $0x290] sm:$0xff]
        %v391 = vld [vmem:[#allocation5 + $0x298] sm:$0xff]
        %v392 = vld [vmem:[#allocation5 + $0x2a0] sm:$0xff]
        %v393 = vld [vmem:[#allocation5 + $0x2a8] sm:$0xff]
        %v394 = vld [vmem:[#allocation5 + $0x2b0] sm:$0xff]
        %v395 = vld [vmem:[#allocation5 + $0x2b8] sm:$0xff]
        %v396 = vld [vmem:[#allocation5 + $0x2c0] sm:$0xff]
        %v397 = vld [vmem:[#allocation5 + $0x2c8] sm:$0xff]
        %v398 = vld [vmem:[#allocation5 + $0x2d0] sm:$0xff]
        %v399 = vld [vmem:[#allocation5 + $0x2d8] sm:$0xff]
        %v400 = vld [vmem:[#allocation5 + $0x2e0] sm:$0xff]
        %v401 = vld [vmem:[#allocation5 + $0x2e8] sm:$0xff]
        %v402 = vld [vmem:[#allocation5 + $0x2f0] sm:$0xff]
        %v403 = vld [vmem:[#allocation5 + $0x2f8] sm:$0xff]
        %v404 = vld [vmem:[#allocation5 + $0x300] sm:$0xff]
        %v405 = vld [vmem:[#allocation5 + $0x308] sm:$0xff]
        %v406 = vld [vmem:[#allocation5 + $0x310] sm:$0xff]
        %v407 = vld [vmem:[#allocation5 + $0x318] sm:$0xff]
        %v408 = vld [vmem:[#allocation5 + $0x320] sm:$0xff]
        %v409 = vld [vmem:[#allocation5 + $0x328] sm:$0xff]
        %v410 = vld [vmem:[#allocation5 + $0x330] sm:$0xff]
        %v411 = vld [vmem:[#allocation5 + $0x338] sm:$0xff]
        %v412 = vld [vmem:[#allocation5 + $0x340] sm:$0xff]
        %v413 = vld [vmem:[#allocation5 + $0x348] sm:$0xff]
        %v414 = vld [vmem:[#allocation5 + $0x350] sm:$0xff]
        %v415 = vld [vmem:[#allocation5 + $0x358] sm:$0xff]
        %v416 = vld [vmem:[#allocation5 + $0x360] sm:$0xff]
        %v417 = vld [vmem:[#allocation5 + $0x368] sm:$0xff]
        %v418 = vld [vmem:[#allocation5 + $0x370] sm:$0xff]
        %v419 = vld [vmem:[#allocation5 + $0x378] sm:$0xff]
        %v420 = vld [vmem:[#allocation5 + $0x380] sm:$0xff]
        %v421 = vld [vmem:[#allocation5 + $0x388] sm:$0xff]
        %v422 = vld [vmem:[#allocation5 + $0x390] sm:$0xff]
        %v423 = vld [vmem:[#allocation5 + $0x398] sm:$0xff]
        %v424 = vld [vmem:[#allocation5 + $0x3a0] sm:$0xff]
        %v425 = vld [vmem:[#allocation5 + $0x3a8] sm:$0xff]
        %v426 = vld [vmem:[#allocation5 + $0x3b0] sm:$0xff]
        %v427 = vld [vmem:[#allocation5 + $0x3b8] sm:$0xff]
        %v428 = vld [vmem:[#allocation5 + $0x3c0] sm:$0xff]
        %v429 = vld [vmem:[#allocation5 + $0x3c8] sm:$0xff]
        %v430 = vld [vmem:[#allocation5 + $0x3d0] sm:$0xff]
        %v431 = vld [vmem:[#allocation5 + $0x3d8] sm:$0xff]
        %v432 = vld [vmem:[#allocation5 + $0x3e0] sm:$0xff]
        %v433 = vld [vmem:[#allocation5 + $0x3e8] sm:$0xff]
        %v434 = vld [vmem:[#allocation5 + $0x3f0] sm:$0xff]
        %v435 = vld [vmem:[#allocation5 + $0x3f8] sm:$0xff]
        %v436 = vld [vmem:[#allocation5 + $0x400] sm:$0xff]
        %v437 = vld [vmem:[#allocation5 + $0x408] sm:$0xff]
        %v438 = vld [vmem:[#allocation5 + $0x410] sm:$0xff]
        %v439 = vld [vmem:[#allocation5 + $0x418] sm:$0xff]
        %v440 = vld [vmem:[#allocation5 + $0x420] sm:$0xff]
        %v441 = vld [vmem:[#allocation5 + $0x428] sm:$0xff]
        %v442 = vld [vmem:[#allocation5 + $0x430] sm:$0xff]
        %v443 = vld [vmem:[#allocation5 + $0x438] sm:$0xff]
        %v444 = vld [vmem:[#allocation5 + $0x440] sm:$0xff]
        %v445 = vld [vmem:[#allocation5 + $0x448] sm:$0xff]
        %v446 = vld [vmem:[#allocation5 + $0x450] sm:$0xff]
        %v447 = vld [vmem:[#allocation5 + $0x458] sm:$0xff]
        %v448 = vld [vmem:[#allocation5 + $0x460] sm:$0xff]
        %v449 = vld [vmem:[#allocation5 + $0x468] sm:$0xff]
        %v450 = vld [vmem:[#allocation5 + $0x470] sm:$0xff]
        %v451 = vld [vmem:[#allocation5 + $0x478] sm:$0xff]
        %v452 = vld [vmem:[#allocation5 + $0x480] sm:$0xff]
        %v453 = vld [vmem:[#allocation5 + $0x488] sm:$0xff]
        %v454 = vld [vmem:[#allocation5 + $0x490] sm:$0xff]
        %v455 = vld [vmem:[#allocation5 + $0x498] sm:$0xff]
        %v456 = vld [vmem:[#allocation5 + $0x4a0] sm:$0xff]
        %v457 = vld [vmem:[#allocation5 + $0x4a8] sm:$0xff]
        %v458 = vld [vmem:[#allocation5 + $0x4b0] sm:$0xff]
        %v459 = vld [vmem:[#allocation5 + $0x4b8] sm:$0xff]
        %v460 = vld [vmem:[#allocation5 + $0x4c0] sm:$0xff]
        %v461 = vld [vmem:[#allocation5 + $0x4c8] sm:$0xff]
        %v462 = vld [vmem:[#allocation5 + $0x4d0] sm:$0xff]
        %v463 = vld [vmem:[#allocation5 + $0x4d8] sm:$0xff]
        %v464 = vld [vmem:[#allocation5 + $0x4e0] sm:$0xff]
        %v465 = vld [vmem:[#allocation5 + $0x4e8] sm:$0xff]
        %v466 = vld [vmem:[#allocation5 + $0x4f0] sm:$0xff]
        %v467 = vld [vmem:[#allocation5 + $0x4f8] sm:$0xff]
        %v468 = vld [vmem:[#allocation5 + $0x500] sm:$0xff]
        %v469 = vld [vmem:[#allocation5 + $0x508] sm:$0xff]
        %v470 = vld [vmem:[#allocation5 + $0x510] sm:$0xff]
        %v471 = vld [vmem:[#allocation5 + $0x518] sm:$0xff]
        %v472 = vld [vmem:[#allocation5 + $0x520] sm:$0xff]
        %v473 = vld [vmem:[#allocation5 + $0x528] sm:$0xff]
        %v474 = vld [vmem:[#allocation5 + $0x530] sm:$0xff]
        %v475 = vld [vmem:[#allocation5 + $0x538] sm:$0xff]
        %v476 = vld [vmem:[#allocation5 + $0x540] sm:$0xff]
        %v477 = vld [vmem:[#allocation5 + $0x548] sm:$0xff]
        %v478 = vld [vmem:[#allocation5 + $0x550] sm:$0xff]
        %v479 = vld [vmem:[#allocation5 + $0x558] sm:$0xff]
        %v480 = vld [vmem:[#allocation5 + $0x560] sm:$0xff]
        %v481 = vld [vmem:[#allocation5 + $0x568] sm:$0xff]
        %v482 = vld [vmem:[#allocation5 + $0x570] sm:$0xff]
        %v483 = vld [vmem:[#allocation5 + $0x578] sm:$0xff]
        %v484 = vld [vmem:[#allocation5 + $0x580] sm:$0xff]
        %v485 = vld [vmem:[#allocation5 + $0x588] sm:$0xff]
        %v486 = vld [vmem:[#allocation5 + $0x590] sm:$0xff]
        %v487 = vld [vmem:[#allocation5 + $0x598] sm:$0xff]
        %v488 = vld [vmem:[#allocation5 + $0x5a0] sm:$0xff]
        %v489 = vld [vmem:[#allocation5 + $0x5a8] sm:$0xff]
        %v490 = vld [vmem:[#allocation5 + $0x5b0] sm:$0xff]
        %v491 = vld [vmem:[#allocation5 + $0x5b8] sm:$0xff]
        %v492 = vld [vmem:[#allocation5 + $0x5c0] sm:$0xff]
        %v493 = vld [vmem:[#allocation5 + $0x5c8] sm:$0xff]
        %v494 = vld [vmem:[#allocation5 + $0x5d0] sm:$0xff]
        %v495 = vld [vmem:[#allocation5 + $0x5d8] sm:$0xff]
        %v496 = vld [vmem:[#allocation5 + $0x5e0] sm:$0xff]
        %v497 = vld [vmem:[#allocation5 + $0x5e8] sm:$0xff]
        %v498 = vld [vmem:[#allocation5 + $0x5f0] sm:$0xff]
        %v499 = vld [vmem:[#allocation5 + $0x5f8] sm:$0xff]
        %500 = vmatprep.subr.mxu0 %v309
        %501 = vmatpush1.msra.mxu0 %v308
        %502 = vmatprep.subr.mxu0 %v315
        %503 = vmatpush1.msra.mxu0 %v314
        %504 = vmatprep.subr.mxu0 %v321
        %505 = vmatpush1.msra.mxu0 %v320
        %506 = vmatprep.subr.mxu0 %v327
        %507 = vmatpush1.msra.mxu0 %v326
        %508 = vmatprep.subr.mxu0 %v333
        %509 = vmatpush1.msra.mxu0 %v332
        %510 = vmatprep.subr.mxu0 %v339
        %511 = vmatpush1.msra.mxu0 %v338
        %512 = vmatprep.subr.mxu0 %v345
        %513 = vmatpush1.msra.mxu0 %v344
        %514 = vmatprep.subr.mxu0 %v351
        %515 = vmatpush1.msra.mxu0 %v350
        %516 = vmatprep.subr.mxu0 %v357
        %517 = vmatpush1.msra.mxu0 %v356
        %518 = vmatprep.subr.mxu0 %v363
        %519 = vmatpush1.msra.mxu0 %v362
        %520 = vmatprep.subr.mxu0 %v369
        %521 = vmatpush1.msra.mxu0 %v368
        %522 = vmatprep.subr.mxu0 %v375
        %523 = vmatpush1.msra.mxu0 %v374
        %524 = vmatprep.subr.mxu0 %v381
        %525 = vmatpush1.msra.mxu0 %v380
        %526 = vmatprep.subr.mxu0 %v387
        %527 = vmatpush1.msra.mxu0 %v386
        %528 = vmatprep.subr.mxu0 %v393
        %529 = vmatpush1.msra.mxu0 %v392
        %530 = vmatprep.subr.mxu0 %v399
        %531 = vmatpush1.msra.mxu0 %v398
        %532 = vmatprep.subr.mxu0 %v405
        %533 = vmatpush1.msra.mxu0 %v404
        %534 = vmatprep.subr.mxu0 %v411
        %535 = vmatpush1.msra.mxu0 %v410
        %536 = vmatprep.subr.mxu0 %v417
        %537 = vmatpush1.msra.mxu0 %v416
        %538 = vmatprep.subr.mxu0 %v423
        %539 = vmatpush1.msra.mxu0 %v422
        %540 = vmatprep.subr.mxu0 %v429
        %541 = vmatpush1.msra.mxu0 %v428
        %542 = vmatprep.subr.mxu0 %v435
        %543 = vmatpush1.msra.mxu0 %v434
        %544 = vmatprep.subr.mxu0 %v441
        %545 = vmatpush1.msra.mxu0 %v440
        %546 = vmatprep.subr.mxu0 %v447
        %547 = vmatpush1.msra.mxu0 %v446
        %548 = vmatprep.subr.mxu0 %v453
        %549 = vmatpush1.msra.mxu0 %v452
        %550 = vmatprep.subr.mxu0 %v459
        %551 = vmatpush1.msra.mxu0 %v458
        %552 = vmatprep.subr.mxu0 %v465
        %553 = vmatpush1.msra.mxu0 %v464
        %554 = vmatprep.subr.mxu0 %v471
        %555 = vmatpush1.msra.mxu0 %v470
        %556 = vmatprep.subr.mxu0 %v477
        %557 = vmatpush1.msra.mxu0 %v476
        %558 = vmatprep.subr.mxu0 %v483
        %559 = vmatpush1.msra.mxu0 %v482
        %560 = vmatprep.subr.mxu0 %v489
        %561 = vmatpush1.msra.mxu0 %v488
        %562 = vmatprep.subr.mxu0 %v495
        %563 = vmatpush1.msra.mxu0 %v494
        %564 = vmatprep.mubr.f32.mxu0 %v181
        %565 = vmatmul.mubr.f32.gmra.mrb[0].mxu0 %v180
        %v566 = vpop.f32.mrb[0].mxu0
        %v567 = vadd.f32 0.0, %v566
        %v568 = vpop.f32.mrb[0].mxu0
        %v569 = vadd.f32 0.0, %v568
        %570 = vmatprep.mubr.f32.mxu0 %v183
        %571 = vmatmul.mubr.f32.gmra.mrb[0].mxu0 %v182
        %v572 = vpop.f32.mrb[0].mxu0
        %v573 = vadd.f32 0.0, %v572
        %v574 = vpop.f32.mrb[0].mxu0
        %v575 = vadd.f32 0.0, %v574
        %576 = vmatprep.mubr.f32.mxu0 %v185
        %577 = vmatmul.mubr.f32.gmra.mrb[0].mxu0 %v184
        %v578 = vpop.f32.mrb[0].mxu0
        %v579 = vadd.f32 0.0, %v578
        %v580 = vpop.f32.mrb[0].mxu0
        %v581 = vadd.f32 0.0, %v580
        %582 = vmatprep.mubr.f32.mxu0 %v187
        %583 = vmatmul.mubr.f32.gmra.mrb[0].mxu0 %v186
        %v584 = vpop.f32.mrb[0].mxu0
        %v585 = vadd.f32 0.0, %v584
        %v586 = vpop.f32.mrb[0].mxu0
        %v587 = vadd.f32 0.0, %v586
        %588 = vmatprep.mubr.f32.mxu0 %v189
        %589 = vmatmul.mubr.f32.gmra.mrb[0].mxu0 %v188
        %v590 = vpop.f32.mrb[0].mxu0
        %v591 = vadd.f32 0.0, %v590
        %v592 = vpop.f32.mrb[0].mxu0
        %v593 = vadd.f32 0.0, %v592
        %594 = vmatprep.mubr.f32.mxu0 %v191
        %595 = vmatmul.mubr.f32.gmra.mrb[0].mxu0 %v190
        %v596 = vpop.f32.mrb[0].mxu0
        %v597 = vadd.f32 0.0, %v596
        %v598 = vpop.f32.mrb[0].mxu0
        %v599 = vadd.f32 0.0, %v598
        %600 = vmatprep.mubr.f32.mxu0 %v193
        %601 = vmatmul.mubr.f32.gmra.mrb[0].mxu0 %v192
        %v602 = vpop.f32.mrb[0].mxu0
        %v603 = vadd.f32 0.0, %v602
        %v604 = vpop.f32.mrb[0].mxu0
        %v605 = vadd.f32 0.0, %v604
        %606 = vmatprep.mubr.f32.mxu0 %v195
        %607 = vmatmul.mubr.f32.gmra.mrb[0].mxu0 %v194
        %v608 = vpop.f32.mrb[0].mxu0
        %v609 = vadd.f32 0.0, %v608
        %v610 = vpop.f32.mrb[0].mxu0
        %v611 = vadd.f32 0.0, %v610
        %612 = vmatprep.mubr.f32.mxu0 %v197
        %613 = vmatmul.mubr.f32.gmra.mrb[0].mxu0 %v196
        %v614 = vpop.f32.mrb[0].mxu0
        %v615 = vadd.f32 0.0, %v614
        %v616 = vpop.f32.mrb[0].mxu0
        %v617 = vadd.f32 0.0, %v616
        %618 = vmatprep.mubr.f32.mxu0 %v199
        %619 = vmatmul.mubr.f32.gmra.mrb[0].mxu0 %v198
        %v620 = vpop.f32.mrb[0].mxu0
        %v621 = vadd.f32 0.0, %v620
        %v622 = vpop.f32.mrb[0].mxu0
        %v623 = vadd.f32 0.0, %v622
        %624 = vmatprep.mubr.f32.mxu0 %v201
        %625 = vmatmul.mubr.f32.gmra.mrb[0].mxu0 %v200
        %v626 = vpop.f32.mrb[0].mxu0
        %v627 = vadd.f32 0.0, %v626
        %v628 = vpop.f32.mrb[0].mxu0
        %v629 = vadd.f32 0.0, %v628
        %630 = vmatprep.mubr.f32.mxu0 %v203
        %631 = vmatmul.mubr.f32.gmra.mrb[0].mxu0 %v202
        %v632 = vpop.f32.mrb[0].mxu0
        %v633 = vadd.f32 0.0, %v632
        %v634 = vpop.f32.mrb[0].mxu0
        %v635 = vadd.f32 0.0, %v634
        %636 = vmatprep.mubr.f32.mxu0 %v205
        %637 = vmatmul.mubr.f32.gmra.mrb[0].mxu0 %v204
        %v638 = vpop.f32.mrb[0].mxu0
        %v639 = vadd.f32 0.0, %v638
        %v640 = vpop.f32.mrb[0].mxu0
        %v641 = vadd.f32 0.0, %v640
        %642 = vmatprep.mubr.f32.mxu0 %v207
        %643 = vmatmul.mubr.f32.gmra.mrb[0].mxu0 %v206
        %v644 = vpop.f32.mrb[0].mxu0
        %v645 = vadd.f32 0.0, %v644
        %v646 = vpop.f32.mrb[0].mxu0
        %v647 = vadd.f32 0.0, %v646
        %648 = vmatprep.mubr.f32.mxu0 %v209
        %649 = vmatmul.mubr.f32.gmra.mrb[0].mxu0 %v208
        %v650 = vpop.f32.mrb[0].mxu0
        %v651 = vadd.f32 0.0, %v650
        %v652 = vpop.f32.mrb[0].mxu0
        %v653 = vadd.f32 0.0, %v652
        %654 = vmatprep.mubr.f32.mxu0 %v211
        %655 = vmatmul.mubr.f32.gmra.mrb[0].mxu0 %v210
        %v656 = vpop.f32.mrb[0].mxu0
        %v657 = vadd.f32 0.0, %v656
        %v658 = vpop.f32.mrb[0].mxu0
        %v659 = vadd.f32 0.0, %v658
        %660 = vmatprep.mubr.f32.mxu0 %v213
        %661 = vmatmul.mubr.f32.gmra.mrb[0].mxu0 %v212
        %v662 = vpop.f32.mrb[0].mxu0
        %v663 = vadd.f32 0.0, %v662
        %v664 = vpop.f32.mrb[0].mxu0
        %v665 = vadd.f32 0.0, %v664
        %666 = vmatprep.mubr.f32.mxu0 %v215
        %667 = vmatmul.mubr.f32.gmra.mrb[0].mxu0 %v214
        %v668 = vpop.f32.mrb[0].mxu0
        %v669 = vadd.f32 0.0, %v668
        %v670 = vpop.f32.mrb[0].mxu0
        %v671 = vadd.f32 0.0, %v670
        %672 = vmatprep.mubr.f32.mxu0 %v217
        %673 = vmatmul.mubr.f32.gmra.mrb[0].mxu0 %v216
        %v674 = vpop.f32.mrb[0].mxu0
        %v675 = vadd.f32 0.0, %v674
        %v676 = vpop.f32.mrb[0].mxu0
        %v677 = vadd.f32 0.0, %v676
        %678 = vmatprep.mubr.f32.mxu0 %v219
        %679 = vmatmul.mubr.f32.gmra.mrb[0].mxu0 %v218
        %v680 = vpop.f32.mrb[0].mxu0
        %v681 = vadd.f32 0.0, %v680
        %v682 = vpop.f32.mrb[0].mxu0
        %v683 = vadd.f32 0.0, %v682
        %684 = vmatprep.mubr.f32.mxu0 %v221
        %685 = vmatmul.mubr.f32.gmra.mrb[0].mxu0 %v220
        %v686 = vpop.f32.mrb[0].mxu0
        %v687 = vadd.f32 0.0, %v686
        %v688 = vpop.f32.mrb[0].mxu0
        %v689 = vadd.f32 0.0, %v688
        %690 = vmatprep.mubr.f32.mxu0 %v223
        %691 = vmatmul.mubr.f32.gmra.mrb[0].mxu0 %v222
        %v692 = vpop.f32.mrb[0].mxu0
        %v693 = vadd.f32 0.0, %v692
        %v694 = vpop.f32.mrb[0].mxu0
        %v695 = vadd.f32 0.0, %v694
        %696 = vmatprep.mubr.f32.mxu0 %v225
        %697 = vmatmul.mubr.f32.gmra.mrb[0].mxu0 %v224
        %v698 = vpop.f32.mrb[0].mxu0
        %v699 = vadd.f32 0.0, %v698
        %v700 = vpop.f32.mrb[0].mxu0
        %v701 = vadd.f32 0.0, %v700
        %702 = vmatprep.mubr.f32.mxu0 %v227
        %703 = vmatmul.mubr.f32.gmra.mrb[0].mxu0 %v226
        %v704 = vpop.f32.mrb[0].mxu0
        %v705 = vadd.f32 0.0, %v704
        %v706 = vpop.f32.mrb[0].mxu0
        %v707 = vadd.f32 0.0, %v706
        %708 = vmatprep.mubr.f32.mxu0 %v229
        %709 = vmatmul.mubr.f32.gmra.mrb[0].mxu0 %v228
        %v710 = vpop.f32.mrb[0].mxu0
        %v711 = vadd.f32 0.0, %v710
        %v712 = vpop.f32.mrb[0].mxu0
        %v713 = vadd.f32 0.0, %v712
        %714 = vmatprep.mubr.f32.mxu0 %v231
        %715 = vmatmul.mubr.f32.gmra.mrb[0].mxu0 %v230
        %v716 = vpop.f32.mrb[0].mxu0
        %v717 = vadd.f32 0.0, %v716
        %v718 = vpop.f32.mrb[0].mxu0
        %v719 = vadd.f32 0.0, %v718
        %720 = vmatprep.mubr.f32.mxu0 %v233
        %721 = vmatmul.mubr.f32.gmra.mrb[0].mxu0 %v232
        %v722 = vpop.f32.mrb[0].mxu0
        %v723 = vadd.f32 0.0, %v722
        %v724 = vpop.f32.mrb[0].mxu0
        %v725 = vadd.f32 0.0, %v724
        %726 = vmatprep.mubr.f32.mxu0 %v235
        %727 = vmatmul.mubr.f32.gmra.mrb[0].mxu0 %v234
        %v728 = vpop.f32.mrb[0].mxu0
        %v729 = vadd.f32 0.0, %v728
        %v730 = vpop.f32.mrb[0].mxu0
        %v731 = vadd.f32 0.0, %v730
        %732 = vmatprep.mubr.f32.mxu0 %v237
        %733 = vmatmul.mubr.f32.gmra.mrb[0].mxu0 %v236
        %v734 = vpop.f32.mrb[0].mxu0
        %v735 = vadd.f32 0.0, %v734
        %v736 = vpop.f32.mrb[0].mxu0
        %v737 = vadd.f32 0.0, %v736
        %738 = vmatprep.mubr.f32.mxu0 %v239
        %739 = vmatmul.mubr.f32.gmra.mrb[0].mxu0 %v238
        %v740 = vpop.f32.mrb[0].mxu0
        %v741 = vadd.f32 0.0, %v740
        %v742 = vpop.f32.mrb[0].mxu0
        %v743 = vadd.f32 0.0, %v742
        %744 = vmatprep.mubr.f32.mxu0 %v241
        %745 = vmatmul.mubr.f32.gmra.mrb[0].mxu0 %v240
        %v746 = vpop.f32.mrb[0].mxu0
        %v747 = vadd.f32 0.0, %v746
        %v748 = vpop.f32.mrb[0].mxu0
        %v749 = vadd.f32 0.0, %v748
        %750 = vmatprep.mubr.f32.mxu0 %v243
        %751 = vmatmul.mubr.f32.gmra.mrb[0].mxu0 %v242
        %v752 = vpop.f32.mrb[0].mxu0
        %v753 = vadd.f32 0.0, %v752
        %v754 = vpop.f32.mrb[0].mxu0
        %v755 = vadd.f32 0.0, %v754
        %756 = vmatprep.mubr.f32.mxu0 %v245
        %757 = vmatmul.mubr.f32.gmra.mrb[0].mxu0 %v244
        %v758 = vpop.f32.mrb[0].mxu0
        %v759 = vadd.f32 0.0, %v758
        %v760 = vpop.f32.mrb[0].mxu0
        %v761 = vadd.f32 0.0, %v760
        %762 = vmatprep.mubr.f32.mxu0 %v247
        %763 = vmatmul.mubr.f32.gmra.mrb[0].mxu0 %v246
        %v764 = vpop.f32.mrb[0].mxu0
        %v765 = vadd.f32 0.0, %v764
        %v766 = vpop.f32.mrb[0].mxu0
        %v767 = vadd.f32 0.0, %v766
        %768 = vmatprep.mubr.f32.mxu0 %v249
        %769 = vmatmul.mubr.f32.gmra.mrb[0].mxu0 %v248
        %v770 = vpop.f32.mrb[0].mxu0
        %v771 = vadd.f32 0.0, %v770
        %v772 = vpop.f32.mrb[0].mxu0
        %v773 = vadd.f32 0.0, %v772
        %774 = vmatprep.mubr.f32.mxu0 %v251
        %775 = vmatmul.mubr.f32.gmra.mrb[0].mxu0 %v250
        %v776 = vpop.f32.mrb[0].mxu0
        %v777 = vadd.f32 0.0, %v776
        %v778 = vpop.f32.mrb[0].mxu0
        %v779 = vadd.f32 0.0, %v778
        %780 = vmatprep.mubr.f32.mxu0 %v253
        %781 = vmatmul.mubr.f32.gmra.mrb[0].mxu0 %v252
        %v782 = vpop.f32.mrb[0].mxu0
        %v783 = vadd.f32 0.0, %v782
        %v784 = vpop.f32.mrb[0].mxu0
        %v785 = vadd.f32 0.0, %v784
        %786 = vmatprep.mubr.f32.mxu0 %v255
        %787 = vmatmul.mubr.f32.gmra.mrb[0].mxu0 %v254
        %v788 = vpop.f32.mrb[0].mxu0
        %v789 = vadd.f32 0.0, %v788
        %v790 = vpop.f32.mrb[0].mxu0
        %v791 = vadd.f32 0.0, %v790
        %792 = vmatprep.mubr.f32.mxu0 %v257
        %793 = vmatmul.mubr.f32.gmra.mrb[0].mxu0 %v256
        %v794 = vpop.f32.mrb[0].mxu0
        %v795 = vadd.f32 0.0, %v794
        %v796 = vpop.f32.mrb[0].mxu0
        %v797 = vadd.f32 0.0, %v796
        %798 = vmatprep.mubr.f32.mxu0 %v259
        %799 = vmatmul.mubr.f32.gmra.mrb[0].mxu0 %v258
        %v800 = vpop.f32.mrb[0].mxu0
        %v801 = vadd.f32 0.0, %v800
        %v802 = vpop.f32.mrb[0].mxu0
        %v803 = vadd.f32 0.0, %v802
        %804 = vmatprep.mubr.f32.mxu0 %v261
        %805 = vmatmul.mubr.f32.gmra.mrb[0].mxu0 %v260
        %v806 = vpop.f32.mrb[0].mxu0
        %v807 = vadd.f32 0.0, %v806
        %v808 = vpop.f32.mrb[0].mxu0
        %v809 = vadd.f32 0.0, %v808
        %810 = vmatprep.mubr.f32.mxu0 %v263
        %811 = vmatmul.mubr.f32.gmra.mrb[0].mxu0 %v262
        %v812 = vpop.f32.mrb[0].mxu0
        %v813 = vadd.f32 0.0, %v812
        %v814 = vpop.f32.mrb[0].mxu0
        %v815 = vadd.f32 0.0, %v814
        %816 = vmatprep.mubr.f32.mxu0 %v265
        %817 = vmatmul.mubr.f32.gmra.mrb[0].mxu0 %v264
        %v818 = vpop.f32.mrb[0].mxu0
        %v819 = vadd.f32 0.0, %v818
        %v820 = vpop.f32.mrb[0].mxu0
        %v821 = vadd.f32 0.0, %v820
        %822 = vmatprep.mubr.f32.mxu0 %v267
        %823 = vmatmul.mubr.f32.gmra.mrb[0].mxu0 %v266
        %v824 = vpop.f32.mrb[0].mxu0
        %v825 = vadd.f32 0.0, %v824
        %v826 = vpop.f32.mrb[0].mxu0
        %v827 = vadd.f32 0.0, %v826
        %828 = vmatprep.mubr.f32.mxu0 %v269
        %829 = vmatmul.mubr.f32.gmra.mrb[0].mxu0 %v268
        %v830 = vpop.f32.mrb[0].mxu0
        %v831 = vadd.f32 0.0, %v830
        %v832 = vpop.f32.mrb[0].mxu0
        %v833 = vadd.f32 0.0, %v832
        %834 = vmatprep.mubr.f32.mxu0 %v271
        %835 = vmatmul.mubr.f32.gmra.mrb[0].mxu0 %v270
        %v836 = vpop.f32.mrb[0].mxu0
        %v837 = vadd.f32 0.0, %v836
        %v838 = vpop.f32.mrb[0].mxu0
        %v839 = vadd.f32 0.0, %v838
        %840 = vmatprep.mubr.f32.mxu0 %v273
        %841 = vmatmul.mubr.f32.gmra.mrb[0].mxu0 %v272
        %v842 = vpop.f32.mrb[0].mxu0
        %v843 = vadd.f32 0.0, %v842
        %v844 = vpop.f32.mrb[0].mxu0
        %v845 = vadd.f32 0.0, %v844
        %846 = vmatprep.mubr.f32.mxu0 %v275
        %847 = vmatmul.mubr.f32.gmra.mrb[0].mxu0 %v274
        %v848 = vpop.f32.mrb[0].mxu0
        %v849 = vadd.f32 0.0, %v848
        %v850 = vpop.f32.mrb[0].mxu0
        %v851 = vadd.f32 0.0, %v850
        %852 = vmatprep.mubr.f32.mxu0 %v277
        %853 = vmatmul.mubr.f32.gmra.mrb[0].mxu0 %v276
        %v854 = vpop.f32.mrb[0].mxu0
        %v855 = vadd.f32 0.0, %v854
        %v856 = vpop.f32.mrb[0].mxu0
        %v857 = vadd.f32 0.0, %v856
        %858 = vmatprep.mubr.f32.mxu0 %v279
        %859 = vmatmul.mubr.f32.gmra.mrb[0].mxu0 %v278
        %v860 = vpop.f32.mrb[0].mxu0
        %v861 = vadd.f32 0.0, %v860
        %v862 = vpop.f32.mrb[0].mxu0
        %v863 = vadd.f32 0.0, %v862
        %864 = vmatprep.mubr.f32.mxu0 %v281
        %865 = vmatmul.mubr.f32.gmra.mrb[0].mxu0 %v280
        %v866 = vpop.f32.mrb[0].mxu0
        %v867 = vadd.f32 0.0, %v866
        %v868 = vpop.f32.mrb[0].mxu0
        %v869 = vadd.f32 0.0, %v868
        %870 = vmatprep.mubr.f32.mxu0 %v283
        %871 = vmatmul.mubr.f32.gmra.mrb[0].mxu0 %v282
        %v872 = vpop.f32.mrb[0].mxu0
        %v873 = vadd.f32 0.0, %v872
        %v874 = vpop.f32.mrb[0].mxu0
        %v875 = vadd.f32 0.0, %v874
        %876 = vmatprep.mubr.f32.mxu0 %v285
        %877 = vmatmul.mubr.f32.gmra.mrb[0].mxu0 %v284
        %v878 = vpop.f32.mrb[0].mxu0
        %v879 = vadd.f32 0.0, %v878
        %v880 = vpop.f32.mrb[0].mxu0
        %v881 = vadd.f32 0.0, %v880
        %882 = vmatprep.mubr.f32.mxu0 %v287
        %883 = vmatmul.mubr.f32.gmra.mrb[0].mxu0 %v286
        %v884 = vpop.f32.mrb[0].mxu0
        %v885 = vadd.f32 0.0, %v884
        %v886 = vpop.f32.mrb[0].mxu0
        %v887 = vadd.f32 0.0, %v886
        %888 = vmatprep.mubr.f32.mxu0 %v289
        %889 = vmatmul.mubr.f32.gmra.mrb[0].mxu0 %v288
        %v890 = vpop.f32.mrb[0].mxu0
        %v891 = vadd.f32 0.0, %v890
        %v892 = vpop.f32.mrb[0].mxu0
        %v893 = vadd.f32 0.0, %v892
        %894 = vmatprep.mubr.f32.mxu0 %v291
        %895 = vmatmul.mubr.f32.gmra.mrb[0].mxu0 %v290
        %v896 = vpop.f32.mrb[0].mxu0
        %v897 = vadd.f32 0.0, %v896
        %v898 = vpop.f32.mrb[0].mxu0
        %v899 = vadd.f32 0.0, %v898
        %900 = vmatprep.mubr.f32.mxu0 %v293
        %901 = vmatmul.mubr.f32.gmra.mrb[0].mxu0 %v292
        %v902 = vpop.f32.mrb[0].mxu0
        %v903 = vadd.f32 0.0, %v902
        %v904 = vpop.f32.mrb[0].mxu0
        %v905 = vadd.f32 0.0, %v904
        %906 = vmatprep.mubr.f32.mxu0 %v295
        %907 = vmatmul.mubr.f32.gmra.mrb[0].mxu0 %v294
        %v908 = vpop.f32.mrb[0].mxu0
        %v909 = vadd.f32 0.0, %v908
        %v910 = vpop.f32.mrb[0].mxu0
        %v911 = vadd.f32 0.0, %v910
        %912 = vmatprep.mubr.f32.mxu0 %v297
        %913 = vmatmul.mubr.f32.gmra.mrb[0].mxu0 %v296
        %v914 = vpop.f32.mrb[0].mxu0
        %v915 = vadd.f32 0.0, %v914
        %v916 = vpop.f32.mrb[0].mxu0
        %v917 = vadd.f32 0.0, %v916
        %918 = vmatprep.mubr.f32.mxu0 %v299
        %919 = vmatmul.mubr.f32.gmra.mrb[0].mxu0 %v298
        %v920 = vpop.f32.mrb[0].mxu0
        %v921 = vadd.f32 0.0, %v920
        %v922 = vpop.f32.mrb[0].mxu0
        %v923 = vadd.f32 0.0, %v922
        %924 = vmatprep.mubr.f32.mxu0 %v301
        %925 = vmatmul.mubr.f32.gmra.mrb[0].mxu0 %v300
        %v926 = vpop.f32.mrb[0].mxu0
        %v927 = vadd.f32 0.0, %v926
        %v928 = vpop.f32.mrb[0].mxu0
        %v929 = vadd.f32 0.0, %v928
        %930 = vmatprep.mubr.f32.mxu0 %v303
        %931 = vmatmul.mubr.f32.gmra.mrb[0].mxu0 %v302
        %v932 = vpop.f32.mrb[0].mxu0
        %v933 = vadd.f32 0.0, %v932
        %v934 = vpop.f32.mrb[0].mxu0
        %v935 = vadd.f32 0.0, %v934
        %936 = vmatprep.mubr.f32.mxu0 %v305
        %937 = vmatmul.mubr.f32.gmra.mrb[0].mxu0 %v304
        %v938 = vpop.f32.mrb[0].mxu0
        %v939 = vadd.f32 0.0, %v938
        %v940 = vpop.f32.mrb[0].mxu0
        %v941 = vadd.f32 0.0, %v940
        %942 = vmatprep.mubr.f32.mxu0 %v307
        %943 = vmatmul.mubr.f32.gmra.mrb[0].mxu0 %v306
        %v944 = vpop.f32.mrb[0].mxu0
        %v945 = vadd.f32 0.0, %v944
        %v946 = vpop.f32.mrb[0].mxu0
        %v947 = vadd.f32 0.0, %v946
        %948 = vdwg.mxu0
        %949 = vmatprep.subr.mxu0 %v311
        %950 = vmatpush1.msra.mxu0 %v310
        %951 = vmatprep.subr.mxu0 %v317
        %952 = vmatpush1.msra.mxu0 %v316
        %953 = vmatprep.subr.mxu0 %v323
        %954 = vmatpush1.msra.mxu0 %v322
        %955 = vmatprep.subr.mxu0 %v329
        %956 = vmatpush1.msra.mxu0 %v328
        %957 = vmatprep.subr.mxu0 %v335
        %958 = vmatpush1.msra.mxu0 %v334
        %959 = vmatprep.subr.mxu0 %v341
        %960 = vmatpush1.msra.mxu0 %v340
        %961 = vmatprep.subr.mxu0 %v347
        %962 = vmatpush1.msra.mxu0 %v346
        %963 = vmatprep.subr.mxu0 %v353
        %964 = vmatpush1.msra.mxu0 %v352
        %965 = vmatprep.subr.mxu0 %v359
        %966 = vmatpush1.msra.mxu0 %v358
        %967 = vmatprep.subr.mxu0 %v365
        %968 = vmatpush1.msra.mxu0 %v364
        %969 = vmatprep.subr.mxu0 %v371
        %970 = vmatpush1.msra.mxu0 %v370
        %971 = vmatprep.subr.mxu0 %v377
        %972 = vmatpush1.msra.mxu0 %v376
        %973 = vmatprep.subr.mxu0 %v383
        %974 = vmatpush1.msra.mxu0 %v382
        %975 = vmatprep.subr.mxu0 %v389
        %976 = vmatpush1.msra.mxu0 %v388
        %977 = vmatprep.subr.mxu0 %v395
        %978 = vmatpush1.msra.mxu0 %v394
        %979 = vmatprep.subr.mxu0 %v401
        %980 = vmatpush1.msra.mxu0 %v400
        %981 = vmatprep.subr.mxu0 %v407
        %982 = vmatpush1.msra.mxu0 %v406
        %983 = vmatprep.subr.mxu0 %v413
        %984 = vmatpush1.msra.mxu0 %v412
        %985 = vmatprep.subr.mxu0 %v419
        %986 = vmatpush1.msra.mxu0 %v418
        %987 = vmatprep.subr.mxu0 %v425
        %988 = vmatpush1.msra.mxu0 %v424
        %989 = vmatprep.subr.mxu0 %v431
        %990 = vmatpush1.msra.mxu0 %v430
        %991 = vmatprep.subr.mxu0 %v437
        %992 = vmatpush1.msra.mxu0 %v436
        %993 = vmatprep.subr.mxu0 %v443
        %994 = vmatpush1.msra.mxu0 %v442
        %995 = vmatprep.subr.mxu0 %v449
        %996 = vmatpush1.msra.mxu0 %v448
        %997 = vmatprep.subr.mxu0 %v455
        %998 = vmatpush1.msra.mxu0 %v454
        %999 = vmatprep.subr.mxu0 %v461
        %1000 = vmatpush1.msra.mxu0 %v460
        %1001 = vmatprep.subr.mxu0 %v467
        %1002 = vmatpush1.msra.mxu0 %v466
        %1003 = vmatprep.subr.mxu0 %v473
        %1004 = vmatpush1.msra.mxu0 %v472
        %1005 = vmatprep.subr.mxu0 %v479
        %1006 = vmatpush1.msra.mxu0 %v478
        %1007 = vmatprep.subr.mxu0 %v485
        %1008 = vmatpush1.msra.mxu0 %v484
        %1009 = vmatprep.subr.mxu0 %v491
        %1010 = vmatpush1.msra.mxu0 %v490
        %1011 = vmatprep.subr.mxu0 %v497
        %1012 = vmatpush1.msra.mxu0 %v496
        %1013 = vmatprep.mubr.f32.mxu0 %v181
        %1014 = vmatmul.mubr.f32.gmra.mrb[0].mxu0 %v180
        %v1015 = vpop.f32.mrb[0].mxu0
        %v1016 = vadd.f32 0.0, %v1015
        %v1017 = vpop.f32.mrb[0].mxu0
        %v1018 = vadd.f32 0.0, %v1017
        %1019 = vmatprep.mubr.f32.mxu0 %v183
        %1020 = vmatmul.mubr.f32.gmra.mrb[0].mxu0 %v182
        %v1021 = vpop.f32.mrb[0].mxu0
        %v1022 = vadd.f32 0.0, %v1021
        %v1023 = vpop.f32.mrb[0].mxu0
        %v1024 = vadd.f32 0.0, %v1023
        %1025 = vmatprep.mubr.f32.mxu0 %v185
        %1026 = vmatmul.mubr.f32.gmra.mrb[0].mxu0 %v184
        %v1027 = vpop.f32.mrb[0].mxu0
        %v1028 = vadd.f32 0.0, %v1027
        %v1029 = vpop.f32.mrb[0].mxu0
        %v1030 = vadd.f32 0.0, %v1029
        %1031 = vmatprep.mubr.f32.mxu0 %v187
        %1032 = vmatmul.mubr.f32.gmra.mrb[0].mxu0 %v186
        %v1033 = vpop.f32.mrb[0].mxu0
        %v1034 = vadd.f32 0.0, %v1033
        %v1035 = vpop.f32.mrb[0].mxu0
        %v1036 = vadd.f32 0.0, %v1035
        %1037 = vmatprep.mubr.f32.mxu0 %v189
        %1038 = vmatmul.mubr.f32.gmra.mrb[0].mxu0 %v188
        %v1039 = vpop.f32.mrb[0].mxu0
        %v1040 = vadd.f32 0.0, %v1039
        %v1041 = vpop.f32.mrb[0].mxu0
        %v1042 = vadd.f32 0.0, %v1041
        %1043 = vmatprep.mubr.f32.mxu0 %v191
        %1044 = vmatmul.mubr.f32.gmra.mrb[0].mxu0 %v190
        %v1045 = vpop.f32.mrb[0].mxu0
        %v1046 = vadd.f32 0.0, %v1045
        %v1047 = vpop.f32.mrb[0].mxu0
        %v1048 = vadd.f32 0.0, %v1047
        %1049 = vmatprep.mubr.f32.mxu0 %v193
        %1050 = vmatmul.mubr.f32.gmra.mrb[0].mxu0 %v192
        %v1051 = vpop.f32.mrb[0].mxu0
        %v1052 = vadd.f32 0.0, %v1051
        %v1053 = vpop.f32.mrb[0].mxu0
        %v1054 = vadd.f32 0.0, %v1053
        %1055 = vmatprep.mubr.f32.mxu0 %v195
        %1056 = vmatmul.mubr.f32.gmra.mrb[0].mxu0 %v194
        %v1057 = vpop.f32.mrb[0].mxu0
        %v1058 = vadd.f32 0.0, %v1057
        %v1059 = vpop.f32.mrb[0].mxu0
        %v1060 = vadd.f32 0.0, %v1059
        %1061 = vmatprep.mubr.f32.mxu0 %v197
        %1062 = vmatmul.mubr.f32.gmra.mrb[0].mxu0 %v196
        %v1063 = vpop.f32.mrb[0].mxu0
        %v1064 = vadd.f32 0.0, %v1063
        %v1065 = vpop.f32.mrb[0].mxu0
        %v1066 = vadd.f32 0.0, %v1065
        %1067 = vmatprep.mubr.f32.mxu0 %v199
        %1068 = vmatmul.mubr.f32.gmra.mrb[0].mxu0 %v198
        %v1069 = vpop.f32.mrb[0].mxu0
        %v1070 = vadd.f32 0.0, %v1069
        %v1071 = vpop.f32.mrb[0].mxu0
        %v1072 = vadd.f32 0.0, %v1071
        %1073 = vmatprep.mubr.f32.mxu0 %v201
        %1074 = vmatmul.mubr.f32.gmra.mrb[0].mxu0 %v200
        %v1075 = vpop.f32.mrb[0].mxu0
        %v1076 = vadd.f32 0.0, %v1075
        %v1077 = vpop.f32.mrb[0].mxu0
        %v1078 = vadd.f32 0.0, %v1077
        %1079 = vmatprep.mubr.f32.mxu0 %v203
        %1080 = vmatmul.mubr.f32.gmra.mrb[0].mxu0 %v202
        %v1081 = vpop.f32.mrb[0].mxu0
        %v1082 = vadd.f32 0.0, %v1081
        %v1083 = vpop.f32.mrb[0].mxu0
        %v1084 = vadd.f32 0.0, %v1083
        %1085 = vmatprep.mubr.f32.mxu0 %v205
        %1086 = vmatmul.mubr.f32.gmra.mrb[0].mxu0 %v204
        %v1087 = vpop.f32.mrb[0].mxu0
        %v1088 = vadd.f32 0.0, %v1087
        %v1089 = vpop.f32.mrb[0].mxu0
        %v1090 = vadd.f32 0.0, %v1089
        %1091 = vmatprep.mubr.f32.mxu0 %v207
        %1092 = vmatmul.mubr.f32.gmra.mrb[0].mxu0 %v206
        %v1093 = vpop.f32.mrb[0].mxu0
        %v1094 = vadd.f32 0.0, %v1093
        %v1095 = vpop.f32.mrb[0].mxu0
        %v1096 = vadd.f32 0.0, %v1095
        %1097 = vmatprep.mubr.f32.mxu0 %v209
        %1098 = vmatmul.mubr.f32.gmra.mrb[0].mxu0 %v208
        %v1099 = vpop.f32.mrb[0].mxu0
        %v1100 = vadd.f32 0.0, %v1099
        %v1101 = vpop.f32.mrb[0].mxu0
        %v1102 = vadd.f32 0.0, %v1101
        %1103 = vmatprep.mubr.f32.mxu0 %v211
        %1104 = vmatmul.mubr.f32.gmra.mrb[0].mxu0 %v210
        %v1105 = vpop.f32.mrb[0].mxu0
        %v1106 = vadd.f32 0.0, %v1105
        %v1107 = vpop.f32.mrb[0].mxu0
        %v1108 = vadd.f32 0.0, %v1107
        %1109 = vmatprep.mubr.f32.mxu0 %v213
        %1110 = vmatmul.mubr.f32.gmra.mrb[0].mxu0 %v212
        %v1111 = vpop.f32.mrb[0].mxu0
        %v1112 = vadd.f32 0.0, %v1111
        %v1113 = vpop.f32.mrb[0].mxu0
        %v1114 = vadd.f32 0.0, %v1113
        %1115 = vmatprep.mubr.f32.mxu0 %v215
        %1116 = vmatmul.mubr.f32.gmra.mrb[0].mxu0 %v214
        %v1117 = vpop.f32.mrb[0].mxu0
        %v1118 = vadd.f32 0.0, %v1117
        %v1119 = vpop.f32.mrb[0].mxu0
        %v1120 = vadd.f32 0.0, %v1119
        %1121 = vmatprep.mubr.f32.mxu0 %v217
        %1122 = vmatmul.mubr.f32.gmra.mrb[0].mxu0 %v216
        %v1123 = vpop.f32.mrb[0].mxu0
        %v1124 = vadd.f32 0.0, %v1123
        %v1125 = vpop.f32.mrb[0].mxu0
        %v1126 = vadd.f32 0.0, %v1125
        %1127 = vmatprep.mubr.f32.mxu0 %v219
        %1128 = vmatmul.mubr.f32.gmra.mrb[0].mxu0 %v218
        %v1129 = vpop.f32.mrb[0].mxu0
        %v1130 = vadd.f32 0.0, %v1129
        %v1131 = vpop.f32.mrb[0].mxu0
        %v1132 = vadd.f32 0.0, %v1131
        %1133 = vmatprep.mubr.f32.mxu0 %v221
        %1134 = vmatmul.mubr.f32.gmra.mrb[0].mxu0 %v220
        %v1135 = vpop.f32.mrb[0].mxu0
        %v1136 = vadd.f32 0.0, %v1135
        %v1137 = vpop.f32.mrb[0].mxu0
        %v1138 = vadd.f32 0.0, %v1137
        %1139 = vmatprep.mubr.f32.mxu0 %v223
        %1140 = vmatmul.mubr.f32.gmra.mrb[0].mxu0 %v222
        %v1141 = vpop.f32.mrb[0].mxu0
        %v1142 = vadd.f32 0.0, %v1141
        %v1143 = vpop.f32.mrb[0].mxu0
        %v1144 = vadd.f32 0.0, %v1143
        %1145 = vmatprep.mubr.f32.mxu0 %v225
        %1146 = vmatmul.mubr.f32.gmra.mrb[0].mxu0 %v224
        %v1147 = vpop.f32.mrb[0].mxu0
        %v1148 = vadd.f32 0.0, %v1147
        %v1149 = vpop.f32.mrb[0].mxu0
        %v1150 = vadd.f32 0.0, %v1149
        %1151 = vmatprep.mubr.f32.mxu0 %v227
        %1152 = vmatmul.mubr.f32.gmra.mrb[0].mxu0 %v226
        %v1153 = vpop.f32.mrb[0].mxu0
        %v1154 = vadd.f32 0.0, %v1153
        %v1155 = vpop.f32.mrb[0].mxu0
        %v1156 = vadd.f32 0.0, %v1155
        %1157 = vmatprep.mubr.f32.mxu0 %v229
        %1158 = vmatmul.mubr.f32.gmra.mrb[0].mxu0 %v228
        %v1159 = vpop.f32.mrb[0].mxu0
        %v1160 = vadd.f32 0.0, %v1159
        %v1161 = vpop.f32.mrb[0].mxu0
        %v1162 = vadd.f32 0.0, %v1161
        %1163 = vmatprep.mubr.f32.mxu0 %v231
        %1164 = vmatmul.mubr.f32.gmra.mrb[0].mxu0 %v230
        %v1165 = vpop.f32.mrb[0].mxu0
        %v1166 = vadd.f32 0.0, %v1165
        %v1167 = vpop.f32.mrb[0].mxu0
        %v1168 = vadd.f32 0.0, %v1167
        %1169 = vmatprep.mubr.f32.mxu0 %v233
        %1170 = vmatmul.mubr.f32.gmra.mrb[0].mxu0 %v232
        %v1171 = vpop.f32.mrb[0].mxu0
        %v1172 = vadd.f32 0.0, %v1171
        %v1173 = vpop.f32.mrb[0].mxu0
        %v1174 = vadd.f32 0.0, %v1173
        %1175 = vmatprep.mubr.f32.mxu0 %v235
        %1176 = vmatmul.mubr.f32.gmra.mrb[0].mxu0 %v234
        %v1177 = vpop.f32.mrb[0].mxu0
        %v1178 = vadd.f32 0.0, %v1177
        %v1179 = vpop.f32.mrb[0].mxu0
        %v1180 = vadd.f32 0.0, %v1179
        %1181 = vmatprep.mubr.f32.mxu0 %v237
        %1182 = vmatmul.mubr.f32.gmra.mrb[0].mxu0 %v236
        %v1183 = vpop.f32.mrb[0].mxu0
        %v1184 = vadd.f32 0.0, %v1183
        %v1185 = vpop.f32.mrb[0].mxu0
        %v1186 = vadd.f32 0.0, %v1185
        %1187 = vmatprep.mubr.f32.mxu0 %v239
        %1188 = vmatmul.mubr.f32.gmra.mrb[0].mxu0 %v238
        %v1189 = vpop.f32.mrb[0].mxu0
        %v1190 = vadd.f32 0.0, %v1189
        %v1191 = vpop.f32.mrb[0].mxu0
        %v1192 = vadd.f32 0.0, %v1191
        %1193 = vmatprep.mubr.f32.mxu0 %v241
        %1194 = vmatmul.mubr.f32.gmra.mrb[0].mxu0 %v240
        %v1195 = vpop.f32.mrb[0].mxu0
        %v1196 = vadd.f32 0.0, %v1195
        %v1197 = vpop.f32.mrb[0].mxu0
        %v1198 = vadd.f32 0.0, %v1197
        %1199 = vmatprep.mubr.f32.mxu0 %v243
        %1200 = vmatmul.mubr.f32.gmra.mrb[0].mxu0 %v242
        %v1201 = vpop.f32.mrb[0].mxu0
        %v1202 = vadd.f32 0.0, %v1201
        %v1203 = vpop.f32.mrb[0].mxu0
        %v1204 = vadd.f32 0.0, %v1203
        %1205 = vmatprep.mubr.f32.mxu0 %v245
        %1206 = vmatmul.mubr.f32.gmra.mrb[0].mxu0 %v244
        %v1207 = vpop.f32.mrb[0].mxu0
        %v1208 = vadd.f32 0.0, %v1207
        %v1209 = vpop.f32.mrb[0].mxu0
        %v1210 = vadd.f32 0.0, %v1209
        %1211 = vmatprep.mubr.f32.mxu0 %v247
        %1212 = vmatmul.mubr.f32.gmra.mrb[0].mxu0 %v246
        %v1213 = vpop.f32.mrb[0].mxu0
        %v1214 = vadd.f32 0.0, %v1213
        %v1215 = vpop.f32.mrb[0].mxu0
        %v1216 = vadd.f32 0.0, %v1215
        %1217 = vmatprep.mubr.f32.mxu0 %v249
        %1218 = vmatmul.mubr.f32.gmra.mrb[0].mxu0 %v248
        %v1219 = vpop.f32.mrb[0].mxu0
        %v1220 = vadd.f32 0.0, %v1219
        %v1221 = vpop.f32.mrb[0].mxu0
        %v1222 = vadd.f32 0.0, %v1221
        %1223 = vmatprep.mubr.f32.mxu0 %v251
        %1224 = vmatmul.mubr.f32.gmra.mrb[0].mxu0 %v250
        %v1225 = vpop.f32.mrb[0].mxu0
        %v1226 = vadd.f32 0.0, %v1225
        %v1227 = vpop.f32.mrb[0].mxu0
        %v1228 = vadd.f32 0.0, %v1227
        %1229 = vmatprep.mubr.f32.mxu0 %v253
        %1230 = vmatmul.mubr.f32.gmra.mrb[0].mxu0 %v252
        %v1231 = vpop.f32.mrb[0].mxu0
        %v1232 = vadd.f32 0.0, %v1231
        %v1233 = vpop.f32.mrb[0].mxu0
        %v1234 = vadd.f32 0.0, %v1233
        %1235 = vmatprep.mubr.f32.mxu0 %v255
        %1236 = vmatmul.mubr.f32.gmra.mrb[0].mxu0 %v254
        %v1237 = vpop.f32.mrb[0].mxu0
        %v1238 = vadd.f32 0.0, %v1237
        %v1239 = vpop.f32.mrb[0].mxu0
        %v1240 = vadd.f32 0.0, %v1239
        %1241 = vmatprep.mubr.f32.mxu0 %v257
        %1242 = vmatmul.mubr.f32.gmra.mrb[0].mxu0 %v256
        %v1243 = vpop.f32.mrb[0].mxu0
        %v1244 = vadd.f32 0.0, %v1243
        %v1245 = vpop.f32.mrb[0].mxu0
        %v1246 = vadd.f32 0.0, %v1245
        %1247 = vmatprep.mubr.f32.mxu0 %v259
        %1248 = vmatmul.mubr.f32.gmra.mrb[0].mxu0 %v258
        %v1249 = vpop.f32.mrb[0].mxu0
        %v1250 = vadd.f32 0.0, %v1249
        %v1251 = vpop.f32.mrb[0].mxu0
        %v1252 = vadd.f32 0.0, %v1251
        %1253 = vmatprep.mubr.f32.mxu0 %v261
        %1254 = vmatmul.mubr.f32.gmra.mrb[0].mxu0 %v260
        %v1255 = vpop.f32.mrb[0].mxu0
        %v1256 = vadd.f32 0.0, %v1255
        %v1257 = vpop.f32.mrb[0].mxu0
        %v1258 = vadd.f32 0.0, %v1257
        %1259 = vmatprep.mubr.f32.mxu0 %v263
        %1260 = vmatmul.mubr.f32.gmra.mrb[0].mxu0 %v262
        %v1261 = vpop.f32.mrb[0].mxu0
        %v1262 = vadd.f32 0.0, %v1261
        %v1263 = vpop.f32.mrb[0].mxu0
        %v1264 = vadd.f32 0.0, %v1263
        %1265 = vmatprep.mubr.f32.mxu0 %v265
        %1266 = vmatmul.mubr.f32.gmra.mrb[0].mxu0 %v264
        %v1267 = vpop.f32.mrb[0].mxu0
        %v1268 = vadd.f32 0.0, %v1267
        %v1269 = vpop.f32.mrb[0].mxu0
        %v1270 = vadd.f32 0.0, %v1269
        %1271 = vmatprep.mubr.f32.mxu0 %v267
        %1272 = vmatmul.mubr.f32.gmra.mrb[0].mxu0 %v266
        %v1273 = vpop.f32.mrb[0].mxu0
        %v1274 = vadd.f32 0.0, %v1273
        %v1275 = vpop.f32.mrb[0].mxu0
        %v1276 = vadd.f32 0.0, %v1275
        %1277 = vmatprep.mubr.f32.mxu0 %v269
        %1278 = vmatmul.mubr.f32.gmra.mrb[0].mxu0 %v268
        %v1279 = vpop.f32.mrb[0].mxu0
        %v1280 = vadd.f32 0.0, %v1279
        %v1281 = vpop.f32.mrb[0].mxu0
        %v1282 = vadd.f32 0.0, %v1281
        %1283 = vmatprep.mubr.f32.mxu0 %v271
        %1284 = vmatmul.mubr.f32.gmra.mrb[0].mxu0 %v270
        %v1285 = vpop.f32.mrb[0].mxu0
        %v1286 = vadd.f32 0.0, %v1285
        %v1287 = vpop.f32.mrb[0].mxu0
        %v1288 = vadd.f32 0.0, %v1287
        %1289 = vmatprep.mubr.f32.mxu0 %v273
        %1290 = vmatmul.mubr.f32.gmra.mrb[0].mxu0 %v272
        %v1291 = vpop.f32.mrb[0].mxu0
        %v1292 = vadd.f32 0.0, %v1291
        %v1293 = vpop.f32.mrb[0].mxu0
        %v1294 = vadd.f32 0.0, %v1293
        %1295 = vmatprep.mubr.f32.mxu0 %v275
        %1296 = vmatmul.mubr.f32.gmra.mrb[0].mxu0 %v274
        %v1297 = vpop.f32.mrb[0].mxu0
        %v1298 = vadd.f32 0.0, %v1297
        %v1299 = vpop.f32.mrb[0].mxu0
        %v1300 = vadd.f32 0.0, %v1299
        %1301 = vmatprep.mubr.f32.mxu0 %v277
        %1302 = vmatmul.mubr.f32.gmra.mrb[0].mxu0 %v276
        %v1303 = vpop.f32.mrb[0].mxu0
        %v1304 = vadd.f32 0.0, %v1303
        %v1305 = vpop.f32.mrb[0].mxu0
        %v1306 = vadd.f32 0.0, %v1305
        %1307 = vmatprep.mubr.f32.mxu0 %v279
        %1308 = vmatmul.mubr.f32.gmra.mrb[0].mxu0 %v278
        %v1309 = vpop.f32.mrb[0].mxu0
        %v1310 = vadd.f32 0.0, %v1309
        %v1311 = vpop.f32.mrb[0].mxu0
        %v1312 = vadd.f32 0.0, %v1311
        %1313 = vmatprep.mubr.f32.mxu0 %v281
        %1314 = vmatmul.mubr.f32.gmra.mrb[0].mxu0 %v280
        %v1315 = vpop.f32.mrb[0].mxu0
        %v1316 = vadd.f32 0.0, %v1315
        %v1317 = vpop.f32.mrb[0].mxu0
        %v1318 = vadd.f32 0.0, %v1317
        %1319 = vmatprep.mubr.f32.mxu0 %v283
        %1320 = vmatmul.mubr.f32.gmra.mrb[0].mxu0 %v282
        %v1321 = vpop.f32.mrb[0].mxu0
        %v1322 = vadd.f32 0.0, %v1321
        %v1323 = vpop.f32.mrb[0].mxu0
        %v1324 = vadd.f32 0.0, %v1323
        %1325 = vmatprep.mubr.f32.mxu0 %v285
        %1326 = vmatmul.mubr.f32.gmra.mrb[0].mxu0 %v284
        %v1327 = vpop.f32.mrb[0].mxu0
        %v1328 = vadd.f32 0.0, %v1327
        %v1329 = vpop.f32.mrb[0].mxu0
        %v1330 = vadd.f32 0.0, %v1329
        %1331 = vmatprep.mubr.f32.mxu0 %v287
        %1332 = vmatmul.mubr.f32.gmra.mrb[0].mxu0 %v286
        %v1333 = vpop.f32.mrb[0].mxu0
        %v1334 = vadd.f32 0.0, %v1333
        %v1335 = vpop.f32.mrb[0].mxu0
        %v1336 = vadd.f32 0.0, %v1335
        %1337 = vmatprep.mubr.f32.mxu0 %v289
        %1338 = vmatmul.mubr.f32.gmra.mrb[0].mxu0 %v288
        %v1339 = vpop.f32.mrb[0].mxu0
        %v1340 = vadd.f32 0.0, %v1339
        %v1341 = vpop.f32.mrb[0].mxu0
        %v1342 = vadd.f32 0.0, %v1341
        %1343 = vmatprep.mubr.f32.mxu0 %v291
        %1344 = vmatmul.mubr.f32.gmra.mrb[0].mxu0 %v290
        %v1345 = vpop.f32.mrb[0].mxu0
        %v1346 = vadd.f32 0.0, %v1345
        %v1347 = vpop.f32.mrb[0].mxu0
        %v1348 = vadd.f32 0.0, %v1347
        %1349 = vmatprep.mubr.f32.mxu0 %v293
        %1350 = vmatmul.mubr.f32.gmra.mrb[0].mxu0 %v292
        %v1351 = vpop.f32.mrb[0].mxu0
        %v1352 = vadd.f32 0.0, %v1351
        %v1353 = vpop.f32.mrb[0].mxu0
        %v1354 = vadd.f32 0.0, %v1353
        %1355 = vmatprep.mubr.f32.mxu0 %v295
        %1356 = vmatmul.mubr.f32.gmra.mrb[0].mxu0 %v294
        %v1357 = vpop.f32.mrb[0].mxu0
        %v1358 = vadd.f32 0.0, %v1357
        %v1359 = vpop.f32.mrb[0].mxu0
        %v1360 = vadd.f32 0.0, %v1359
        %1361 = vmatprep.mubr.f32.mxu0 %v297
        %1362 = vmatmul.mubr.f32.gmra.mrb[0].mxu0 %v296
        %v1363 = vpop.f32.mrb[0].mxu0
        %v1364 = vadd.f32 0.0, %v1363
        %v1365 = vpop.f32.mrb[0].mxu0
        %v1366 = vadd.f32 0.0, %v1365
        %1367 = vmatprep.mubr.f32.mxu0 %v299
        %1368 = vmatmul.mubr.f32.gmra.mrb[0].mxu0 %v298
        %v1369 = vpop.f32.mrb[0].mxu0
        %v1370 = vadd.f32 0.0, %v1369
        %v1371 = vpop.f32.mrb[0].mxu0
        %v1372 = vadd.f32 0.0, %v1371
        %1373 = vmatprep.mubr.f32.mxu0 %v301
        %1374 = vmatmul.mubr.f32.gmra.mrb[0].mxu0 %v300
        %v1375 = vpop.f32.mrb[0].mxu0
        %v1376 = vadd.f32 0.0, %v1375
        %v1377 = vpop.f32.mrb[0].mxu0
        %v1378 = vadd.f32 0.0, %v1377
        %1379 = vmatprep.mubr.f32.mxu0 %v303
        %1380 = vmatmul.mubr.f32.gmra.mrb[0].mxu0 %v302
        %v1381 = vpop.f32.mrb[0].mxu0
        %v1382 = vadd.f32 0.0, %v1381
        %v1383 = vpop.f32.mrb[0].mxu0
        %v1384 = vadd.f32 0.0, %v1383
        %1385 = vmatprep.mubr.f32.mxu0 %v305
        %1386 = vmatmul.mubr.f32.gmra.mrb[0].mxu0 %v304
        %v1387 = vpop.f32.mrb[0].mxu0
        %v1388 = vadd.f32 0.0, %v1387
        %v1389 = vpop.f32.mrb[0].mxu0
        %v1390 = vadd.f32 0.0, %v1389
        %1391 = vmatprep.mubr.f32.mxu0 %v307
        %1392 = vmatmul.mubr.f32.gmra.mrb[0].mxu0 %v306
        %v1393 = vpop.f32.mrb[0].mxu0
        %v1394 = vadd.f32 0.0, %v1393
        %v1395 = vpop.f32.mrb[0].mxu0
        %v1396 = vadd.f32 0.0, %v1395
        %1397 = vdwg.mxu0
        %1398 = vmatprep.subr.mxu0 %v313
        %1399 = vmatpush1.msra.mxu0 %v312
        %1400 = vmatprep.subr.mxu0 %v319
        %1401 = vmatpush1.msra.mxu0 %v318
        %1402 = vmatprep.subr.mxu0 %v325
        %1403 = vmatpush1.msra.mxu0 %v324
        %1404 = vmatprep.subr.mxu0 %v331
        %1405 = vmatpush1.msra.mxu0 %v330
        %1406 = vmatprep.subr.mxu0 %v337
        %1407 = vmatpush1.msra.mxu0 %v336
        %1408 = vmatprep.subr.mxu0 %v343
        %1409 = vmatpush1.msra.mxu0 %v342
        %1410 = vmatprep.subr.mxu0 %v349
        %1411 = vmatpush1.msra.mxu0 %v348
        %1412 = vmatprep.subr.mxu0 %v355
        %1413 = vmatpush1.msra.mxu0 %v354
        %1414 = vmatprep.subr.mxu0 %v361
        %1415 = vmatpush1.msra.mxu0 %v360
        %1416 = vmatprep.subr.mxu0 %v367
        %1417 = vmatpush1.msra.mxu0 %v366
        %1418 = vmatprep.subr.mxu0 %v373
        %1419 = vmatpush1.msra.mxu0 %v372
        %1420 = vmatprep.subr.mxu0 %v379
        %1421 = vmatpush1.msra.mxu0 %v378
        %1422 = vmatprep.subr.mxu0 %v385
        %1423 = vmatpush1.msra.mxu0 %v384
        %1424 = vmatprep.subr.mxu0 %v391
        %1425 = vmatpush1.msra.mxu0 %v390
        %1426 = vmatprep.subr.mxu0 %v397
        %1427 = vmatpush1.msra.mxu0 %v396
        %1428 = vmatprep.subr.mxu0 %v403
        %1429 = vmatpush1.msra.mxu0 %v402
        %1430 = vmatprep.subr.mxu0 %v409
        %1431 = vmatpush1.msra.mxu0 %v408
        %1432 = vmatprep.subr.mxu0 %v415
        %1433 = vmatpush1.msra.mxu0 %v414
        %1434 = vmatprep.subr.mxu0 %v421
        %1435 = vmatpush1.msra.mxu0 %v420
        %1436 = vmatprep.subr.mxu0 %v427
        %1437 = vmatpush1.msra.mxu0 %v426
        %1438 = vmatprep.subr.mxu0 %v433
        %1439 = vmatpush1.msra.mxu0 %v432
        %1440 = vmatprep.subr.mxu0 %v439
        %1441 = vmatpush1.msra.mxu0 %v438
        %1442 = vmatprep.subr.mxu0 %v445
        %1443 = vmatpush1.msra.mxu0 %v444
        %1444 = vmatprep.subr.mxu0 %v451
        %1445 = vmatpush1.msra.mxu0 %v450
        %1446 = vmatprep.subr.mxu0 %v457
        %1447 = vmatpush1.msra.mxu0 %v456
        %1448 = vmatprep.subr.mxu0 %v463
        %1449 = vmatpush1.msra.mxu0 %v462
        %1450 = vmatprep.subr.mxu0 %v469
        %1451 = vmatpush1.msra.mxu0 %v468
        %1452 = vmatprep.subr.mxu0 %v475
        %1453 = vmatpush1.msra.mxu0 %v474
        %1454 = vmatprep.subr.mxu0 %v481
        %1455 = vmatpush1.msra.mxu0 %v480
        %1456 = vmatprep.subr.mxu0 %v487
        %1457 = vmatpush1.msra.mxu0 %v486
        %1458 = vmatprep.subr.mxu0 %v493
        %1459 = vmatpush1.msra.mxu0 %v492
        %1460 = vmatprep.subr.mxu0 %v499
        %1461 = vmatpush1.msra.mxu0 %v498
        %1462 = vmatprep.mubr.f32.mxu0 %v181
        %1463 = vmatmul.mubr.f32.gmra.mrb[0].mxu0 %v180
        %v1464 = vpop.f32.mrb[0].mxu0
        %v1465 = vadd.f32 0.0, %v1464
        %v1466 = vpop.f32.mrb[0].mxu0
        %v1467 = vadd.f32 0.0, %v1466
        %1468 = vmatprep.mubr.f32.mxu0 %v183
        %1469 = vmatmul.mubr.f32.gmra.mrb[0].mxu0 %v182
        %v1470 = vpop.f32.mrb[0].mxu0
        %v1471 = vadd.f32 0.0, %v1470
        %v1472 = vpop.f32.mrb[0].mxu0
        %v1473 = vadd.f32 0.0, %v1472
        %1474 = vmatprep.mubr.f32.mxu0 %v185
        %1475 = vmatmul.mubr.f32.gmra.mrb[0].mxu0 %v184
        %v1476 = vpop.f32.mrb[0].mxu0
        %v1477 = vadd.f32 0.0, %v1476
        %v1478 = vpop.f32.mrb[0].mxu0
        %v1479 = vadd.f32 0.0, %v1478
        %1480 = vmatprep.mubr.f32.mxu0 %v187
        %1481 = vmatmul.mubr.f32.gmra.mrb[0].mxu0 %v186
        %v1482 = vpop.f32.mrb[0].mxu0
        %v1483 = vadd.f32 0.0, %v1482
        %v1484 = vpop.f32.mrb[0].mxu0
        %v1485 = vadd.f32 0.0, %v1484
        %1486 = vmatprep.mubr.f32.mxu0 %v189
        %1487 = vmatmul.mubr.f32.gmra.mrb[0].mxu0 %v188
        %v1488 = vpop.f32.mrb[0].mxu0
        %v1489 = vadd.f32 0.0, %v1488
        %v1490 = vpop.f32.mrb[0].mxu0
        %v1491 = vadd.f32 0.0, %v1490
        %1492 = vmatprep.mubr.f32.mxu0 %v191
        %1493 = vmatmul.mubr.f32.gmra.mrb[0].mxu0 %v190
        %v1494 = vpop.f32.mrb[0].mxu0
        %v1495 = vadd.f32 0.0, %v1494
        %v1496 = vpop.f32.mrb[0].mxu0
        %v1497 = vadd.f32 0.0, %v1496
        %1498 = vmatprep.mubr.f32.mxu0 %v193
        %1499 = vmatmul.mubr.f32.gmra.mrb[0].mxu0 %v192
        %v1500 = vpop.f32.mrb[0].mxu0
        %v1501 = vadd.f32 0.0, %v1500
        %v1502 = vpop.f32.mrb[0].mxu0
        %v1503 = vadd.f32 0.0, %v1502
        %1504 = vmatprep.mubr.f32.mxu0 %v195
        %1505 = vmatmul.mubr.f32.gmra.mrb[0].mxu0 %v194
        %v1506 = vpop.f32.mrb[0].mxu0
        %v1507 = vadd.f32 0.0, %v1506
        %v1508 = vpop.f32.mrb[0].mxu0
        %v1509 = vadd.f32 0.0, %v1508
        %1510 = vmatprep.mubr.f32.mxu0 %v197
        %1511 = vmatmul.mubr.f32.gmra.mrb[0].mxu0 %v196
        %v1512 = vpop.f32.mrb[0].mxu0
        %v1513 = vadd.f32 0.0, %v1512
        %v1514 = vpop.f32.mrb[0].mxu0
        %v1515 = vadd.f32 0.0, %v1514
        %1516 = vmatprep.mubr.f32.mxu0 %v199
        %1517 = vmatmul.mubr.f32.gmra.mrb[0].mxu0 %v198
        %v1518 = vpop.f32.mrb[0].mxu0
        %v1519 = vadd.f32 0.0, %v1518
        %v1520 = vpop.f32.mrb[0].mxu0
        %v1521 = vadd.f32 0.0, %v1520
        %1522 = vmatprep.mubr.f32.mxu0 %v201
        %1523 = vmatmul.mubr.f32.gmra.mrb[0].mxu0 %v200
        %v1524 = vpop.f32.mrb[0].mxu0
        %v1525 = vadd.f32 0.0, %v1524
        %v1526 = vpop.f32.mrb[0].mxu0
        %v1527 = vadd.f32 0.0, %v1526
        %1528 = vmatprep.mubr.f32.mxu0 %v203
        %1529 = vmatmul.mubr.f32.gmra.mrb[0].mxu0 %v202
        %v1530 = vpop.f32.mrb[0].mxu0
        %v1531 = vadd.f32 0.0, %v1530
        %v1532 = vpop.f32.mrb[0].mxu0
        %v1533 = vadd.f32 0.0, %v1532
        %1534 = vmatprep.mubr.f32.mxu0 %v205
        %1535 = vmatmul.mubr.f32.gmra.mrb[0].mxu0 %v204
        %v1536 = vpop.f32.mrb[0].mxu0
        %v1537 = vadd.f32 0.0, %v1536
        %v1538 = vpop.f32.mrb[0].mxu0
        %v1539 = vadd.f32 0.0, %v1538
        %1540 = vmatprep.mubr.f32.mxu0 %v207
        %1541 = vmatmul.mubr.f32.gmra.mrb[0].mxu0 %v206
        %v1542 = vpop.f32.mrb[0].mxu0
        %v1543 = vadd.f32 0.0, %v1542
        %v1544 = vpop.f32.mrb[0].mxu0
        %v1545 = vadd.f32 0.0, %v1544
        %1546 = vmatprep.mubr.f32.mxu0 %v209
        %1547 = vmatmul.mubr.f32.gmra.mrb[0].mxu0 %v208
        %v1548 = vpop.f32.mrb[0].mxu0
        %v1549 = vadd.f32 0.0, %v1548
        %v1550 = vpop.f32.mrb[0].mxu0
        %v1551 = vadd.f32 0.0, %v1550
        %1552 = vmatprep.mubr.f32.mxu0 %v211
        %1553 = vmatmul.mubr.f32.gmra.mrb[0].mxu0 %v210
        %v1554 = vpop.f32.mrb[0].mxu0
        %v1555 = vadd.f32 0.0, %v1554
        %v1556 = vpop.f32.mrb[0].mxu0
        %v1557 = vadd.f32 0.0, %v1556
        %1558 = vmatprep.mubr.f32.mxu0 %v213
        %1559 = vmatmul.mubr.f32.gmra.mrb[0].mxu0 %v212
        %v1560 = vpop.f32.mrb[0].mxu0
        %v1561 = vadd.f32 0.0, %v1560
        %v1562 = vpop.f32.mrb[0].mxu0
        %v1563 = vadd.f32 0.0, %v1562
        %1564 = vmatprep.mubr.f32.mxu0 %v215
        %1565 = vmatmul.mubr.f32.gmra.mrb[0].mxu0 %v214
        %v1566 = vpop.f32.mrb[0].mxu0
        %v1567 = vadd.f32 0.0, %v1566
        %v1568 = vpop.f32.mrb[0].mxu0
        %v1569 = vadd.f32 0.0, %v1568
        %1570 = vmatprep.mubr.f32.mxu0 %v217
        %1571 = vmatmul.mubr.f32.gmra.mrb[0].mxu0 %v216
        %v1572 = vpop.f32.mrb[0].mxu0
        %v1573 = vadd.f32 0.0, %v1572
        %v1574 = vpop.f32.mrb[0].mxu0
        %v1575 = vadd.f32 0.0, %v1574
        %1576 = vmatprep.mubr.f32.mxu0 %v219
        %1577 = vmatmul.mubr.f32.gmra.mrb[0].mxu0 %v218
        %v1578 = vpop.f32.mrb[0].mxu0
        %v1579 = vadd.f32 0.0, %v1578
        %v1580 = vpop.f32.mrb[0].mxu0
        %v1581 = vadd.f32 0.0, %v1580
        %1582 = vmatprep.mubr.f32.mxu0 %v221
        %1583 = vmatmul.mubr.f32.gmra.mrb[0].mxu0 %v220
        %v1584 = vpop.f32.mrb[0].mxu0
        %v1585 = vadd.f32 0.0, %v1584
        %v1586 = vpop.f32.mrb[0].mxu0
        %v1587 = vadd.f32 0.0, %v1586
        %1588 = vmatprep.mubr.f32.mxu0 %v223
        %1589 = vmatmul.mubr.f32.gmra.mrb[0].mxu0 %v222
        %v1590 = vpop.f32.mrb[0].mxu0
        %v1591 = vadd.f32 0.0, %v1590
        %v1592 = vpop.f32.mrb[0].mxu0
        %v1593 = vadd.f32 0.0, %v1592
        %1594 = vmatprep.mubr.f32.mxu0 %v225
        %1595 = vmatmul.mubr.f32.gmra.mrb[0].mxu0 %v224
        %v1596 = vpop.f32.mrb[0].mxu0
        %v1597 = vadd.f32 0.0, %v1596
        %v1598 = vpop.f32.mrb[0].mxu0
        %v1599 = vadd.f32 0.0, %v1598
        %1600 = vmatprep.mubr.f32.mxu0 %v227
        %1601 = vmatmul.mubr.f32.gmra.mrb[0].mxu0 %v226
        %v1602 = vpop.f32.mrb[0].mxu0
        %v1603 = vadd.f32 0.0, %v1602
        %v1604 = vpop.f32.mrb[0].mxu0
        %v1605 = vadd.f32 0.0, %v1604
        %1606 = vmatprep.mubr.f32.mxu0 %v229
        %1607 = vmatmul.mubr.f32.gmra.mrb[0].mxu0 %v228
        %v1608 = vpop.f32.mrb[0].mxu0
        %v1609 = vadd.f32 0.0, %v1608
        %v1610 = vpop.f32.mrb[0].mxu0
        %v1611 = vadd.f32 0.0, %v1610
        %1612 = vmatprep.mubr.f32.mxu0 %v231
        %1613 = vmatmul.mubr.f32.gmra.mrb[0].mxu0 %v230
        %v1614 = vpop.f32.mrb[0].mxu0
        %v1615 = vadd.f32 0.0, %v1614
        %v1616 = vpop.f32.mrb[0].mxu0
        %v1617 = vadd.f32 0.0, %v1616
        %1618 = vmatprep.mubr.f32.mxu0 %v233
        %1619 = vmatmul.mubr.f32.gmra.mrb[0].mxu0 %v232
        %v1620 = vpop.f32.mrb[0].mxu0
        %v1621 = vadd.f32 0.0, %v1620
        %v1622 = vpop.f32.mrb[0].mxu0
        %v1623 = vadd.f32 0.0, %v1622
        %1624 = vmatprep.mubr.f32.mxu0 %v235
        %1625 = vmatmul.mubr.f32.gmra.mrb[0].mxu0 %v234
        %v1626 = vpop.f32.mrb[0].mxu0
        %v1627 = vadd.f32 0.0, %v1626
        %v1628 = vpop.f32.mrb[0].mxu0
        %v1629 = vadd.f32 0.0, %v1628
        %1630 = vmatprep.mubr.f32.mxu0 %v237
        %1631 = vmatmul.mubr.f32.gmra.mrb[0].mxu0 %v236
        %v1632 = vpop.f32.mrb[0].mxu0
        %v1633 = vadd.f32 0.0, %v1632
        %v1634 = vpop.f32.mrb[0].mxu0
        %v1635 = vadd.f32 0.0, %v1634
        %1636 = vmatprep.mubr.f32.mxu0 %v239
        %1637 = vmatmul.mubr.f32.gmra.mrb[0].mxu0 %v238
        %v1638 = vpop.f32.mrb[0].mxu0
        %v1639 = vadd.f32 0.0, %v1638
        %v1640 = vpop.f32.mrb[0].mxu0
        %v1641 = vadd.f32 0.0, %v1640
        %1642 = vmatprep.mubr.f32.mxu0 %v241
        %1643 = vmatmul.mubr.f32.gmra.mrb[0].mxu0 %v240
        %v1644 = vpop.f32.mrb[0].mxu0
        %v1645 = vadd.f32 0.0, %v1644
        %v1646 = vpop.f32.mrb[0].mxu0
        %v1647 = vadd.f32 0.0, %v1646
        %1648 = vmatprep.mubr.f32.mxu0 %v243
        %1649 = vmatmul.mubr.f32.gmra.mrb[0].mxu0 %v242
        %v1650 = vpop.f32.mrb[0].mxu0
        %v1651 = vadd.f32 0.0, %v1650
        %v1652 = vpop.f32.mrb[0].mxu0
        %v1653 = vadd.f32 0.0, %v1652
        %1654 = vmatprep.mubr.f32.mxu0 %v245
        %1655 = vmatmul.mubr.f32.gmra.mrb[0].mxu0 %v244
        %v1656 = vpop.f32.mrb[0].mxu0
        %v1657 = vadd.f32 0.0, %v1656
        %v1658 = vpop.f32.mrb[0].mxu0
        %v1659 = vadd.f32 0.0, %v1658
        %1660 = vmatprep.mubr.f32.mxu0 %v247
        %1661 = vmatmul.mubr.f32.gmra.mrb[0].mxu0 %v246
        %v1662 = vpop.f32.mrb[0].mxu0
        %v1663 = vadd.f32 0.0, %v1662
        %v1664 = vpop.f32.mrb[0].mxu0
        %v1665 = vadd.f32 0.0, %v1664
        %1666 = vmatprep.mubr.f32.mxu0 %v249
        %1667 = vmatmul.mubr.f32.gmra.mrb[0].mxu0 %v248
        %v1668 = vpop.f32.mrb[0].mxu0
        %v1669 = vadd.f32 0.0, %v1668
        %v1670 = vpop.f32.mrb[0].mxu0
        %v1671 = vadd.f32 0.0, %v1670
        %1672 = vmatprep.mubr.f32.mxu0 %v251
        %1673 = vmatmul.mubr.f32.gmra.mrb[0].mxu0 %v250
        %v1674 = vpop.f32.mrb[0].mxu0
        %v1675 = vadd.f32 0.0, %v1674
        %v1676 = vpop.f32.mrb[0].mxu0
        %v1677 = vadd.f32 0.0, %v1676
        %1678 = vmatprep.mubr.f32.mxu0 %v253
        %1679 = vmatmul.mubr.f32.gmra.mrb[0].mxu0 %v252
        %v1680 = vpop.f32.mrb[0].mxu0
        %v1681 = vadd.f32 0.0, %v1680
        %v1682 = vpop.f32.mrb[0].mxu0
        %v1683 = vadd.f32 0.0, %v1682
        %1684 = vmatprep.mubr.f32.mxu0 %v255
        %1685 = vmatmul.mubr.f32.gmra.mrb[0].mxu0 %v254
        %v1686 = vpop.f32.mrb[0].mxu0
        %v1687 = vadd.f32 0.0, %v1686
        %v1688 = vpop.f32.mrb[0].mxu0
        %v1689 = vadd.f32 0.0, %v1688
        %1690 = vmatprep.mubr.f32.mxu0 %v257
        %1691 = vmatmul.mubr.f32.gmra.mrb[0].mxu0 %v256
        %v1692 = vpop.f32.mrb[0].mxu0
        %v1693 = vadd.f32 0.0, %v1692
        %v1694 = vpop.f32.mrb[0].mxu0
        %v1695 = vadd.f32 0.0, %v1694
        %1696 = vmatprep.mubr.f32.mxu0 %v259
        %1697 = vmatmul.mubr.f32.gmra.mrb[0].mxu0 %v258
        %v1698 = vpop.f32.mrb[0].mxu0
        %v1699 = vadd.f32 0.0, %v1698
        %v1700 = vpop.f32.mrb[0].mxu0
        %v1701 = vadd.f32 0.0, %v1700
        %1702 = vmatprep.mubr.f32.mxu0 %v261
        %1703 = vmatmul.mubr.f32.gmra.mrb[0].mxu0 %v260
        %v1704 = vpop.f32.mrb[0].mxu0
        %v1705 = vadd.f32 0.0, %v1704
        %v1706 = vpop.f32.mrb[0].mxu0
        %v1707 = vadd.f32 0.0, %v1706
        %1708 = vmatprep.mubr.f32.mxu0 %v263
        %1709 = vmatmul.mubr.f32.gmra.mrb[0].mxu0 %v262
        %v1710 = vpop.f32.mrb[0].mxu0
        %v1711 = vadd.f32 0.0, %v1710
        %v1712 = vpop.f32.mrb[0].mxu0
        %v1713 = vadd.f32 0.0, %v1712
        %1714 = vmatprep.mubr.f32.mxu0 %v265
        %1715 = vmatmul.mubr.f32.gmra.mrb[0].mxu0 %v264
        %v1716 = vpop.f32.mrb[0].mxu0
        %v1717 = vadd.f32 0.0, %v1716
        %v1718 = vpop.f32.mrb[0].mxu0
        %v1719 = vadd.f32 0.0, %v1718
        %1720 = vmatprep.mubr.f32.mxu0 %v267
        %1721 = vmatmul.mubr.f32.gmra.mrb[0].mxu0 %v266
        %v1722 = vpop.f32.mrb[0].mxu0
        %v1723 = vadd.f32 0.0, %v1722
        %v1724 = vpop.f32.mrb[0].mxu0
        %v1725 = vadd.f32 0.0, %v1724
        %1726 = vmatprep.mubr.f32.mxu0 %v269
        %1727 = vmatmul.mubr.f32.gmra.mrb[0].mxu0 %v268
        %v1728 = vpop.f32.mrb[0].mxu0
        %v1729 = vadd.f32 0.0, %v1728
        %v1730 = vpop.f32.mrb[0].mxu0
        %v1731 = vadd.f32 0.0, %v1730
        %1732 = vmatprep.mubr.f32.mxu0 %v271
        %1733 = vmatmul.mubr.f32.gmra.mrb[0].mxu0 %v270
        %v1734 = vpop.f32.mrb[0].mxu0
        %v1735 = vadd.f32 0.0, %v1734
        %v1736 = vpop.f32.mrb[0].mxu0
        %v1737 = vadd.f32 0.0, %v1736
        %1738 = vmatprep.mubr.f32.mxu0 %v273
        %1739 = vmatmul.mubr.f32.gmra.mrb[0].mxu0 %v272
        %v1740 = vpop.f32.mrb[0].mxu0
        %v1741 = vadd.f32 0.0, %v1740
        %v1742 = vpop.f32.mrb[0].mxu0
        %v1743 = vadd.f32 0.0, %v1742
        %1744 = vmatprep.mubr.f32.mxu0 %v275
        %1745 = vmatmul.mubr.f32.gmra.mrb[0].mxu0 %v274
        %v1746 = vpop.f32.mrb[0].mxu0
        %v1747 = vadd.f32 0.0, %v1746
        %v1748 = vpop.f32.mrb[0].mxu0
        %v1749 = vadd.f32 0.0, %v1748
        %1750 = vmatprep.mubr.f32.mxu0 %v277
        %1751 = vmatmul.mubr.f32.gmra.mrb[0].mxu0 %v276
        %v1752 = vpop.f32.mrb[0].mxu0
        %v1753 = vadd.f32 0.0, %v1752
        %v1754 = vpop.f32.mrb[0].mxu0
        %v1755 = vadd.f32 0.0, %v1754
        %1756 = vmatprep.mubr.f32.mxu0 %v279
        %1757 = vmatmul.mubr.f32.gmra.mrb[0].mxu0 %v278
        %v1758 = vpop.f32.mrb[0].mxu0
        %v1759 = vadd.f32 0.0, %v1758
        %v1760 = vpop.f32.mrb[0].mxu0
        %v1761 = vadd.f32 0.0, %v1760
        %1762 = vmatprep.mubr.f32.mxu0 %v281
        %1763 = vmatmul.mubr.f32.gmra.mrb[0].mxu0 %v280
        %v1764 = vpop.f32.mrb[0].mxu0
        %v1765 = vadd.f32 0.0, %v1764
        %v1766 = vpop.f32.mrb[0].mxu0
        %v1767 = vadd.f32 0.0, %v1766
        %1768 = vmatprep.mubr.f32.mxu0 %v283
        %1769 = vmatmul.mubr.f32.gmra.mrb[0].mxu0 %v282
        %v1770 = vpop.f32.mrb[0].mxu0
        %v1771 = vadd.f32 0.0, %v1770
        %v1772 = vpop.f32.mrb[0].mxu0
        %v1773 = vadd.f32 0.0, %v1772
        %1774 = vmatprep.mubr.f32.mxu0 %v285
        %1775 = vmatmul.mubr.f32.gmra.mrb[0].mxu0 %v284
        %v1776 = vpop.f32.mrb[0].mxu0
        %v1777 = vadd.f32 0.0, %v1776
        %v1778 = vpop.f32.mrb[0].mxu0
        %v1779 = vadd.f32 0.0, %v1778
        %1780 = vmatprep.mubr.f32.mxu0 %v287
        %1781 = vmatmul.mubr.f32.gmra.mrb[0].mxu0 %v286
        %v1782 = vpop.f32.mrb[0].mxu0
        %v1783 = vadd.f32 0.0, %v1782
        %v1784 = vpop.f32.mrb[0].mxu0
        %v1785 = vadd.f32 0.0, %v1784
        %1786 = vmatprep.mubr.f32.mxu0 %v289
        %1787 = vmatmul.mubr.f32.gmra.mrb[0].mxu0 %v288
        %v1788 = vpop.f32.mrb[0].mxu0
        %v1789 = vadd.f32 0.0, %v1788
        %v1790 = vpop.f32.mrb[0].mxu0
        %v1791 = vadd.f32 0.0, %v1790
        %1792 = vmatprep.mubr.f32.mxu0 %v291
        %1793 = vmatmul.mubr.f32.gmra.mrb[0].mxu0 %v290
        %v1794 = vpop.f32.mrb[0].mxu0
        %v1795 = vadd.f32 0.0, %v1794
        %v1796 = vpop.f32.mrb[0].mxu0
        %v1797 = vadd.f32 0.0, %v1796
        %1798 = vmatprep.mubr.f32.mxu0 %v293
        %1799 = vmatmul.mubr.f32.gmra.mrb[0].mxu0 %v292
        %v1800 = vpop.f32.mrb[0].mxu0
        %v1801 = vadd.f32 0.0, %v1800
        %v1802 = vpop.f32.mrb[0].mxu0
        %v1803 = vadd.f32 0.0, %v1802
        %1804 = vmatprep.mubr.f32.mxu0 %v295
        %1805 = vmatmul.mubr.f32.gmra.mrb[0].mxu0 %v294
        %v1806 = vpop.f32.mrb[0].mxu0
        %v1807 = vadd.f32 0.0, %v1806
        %v1808 = vpop.f32.mrb[0].mxu0
        %v1809 = vadd.f32 0.0, %v1808
        %1810 = vmatprep.mubr.f32.mxu0 %v297
        %1811 = vmatmul.mubr.f32.gmra.mrb[0].mxu0 %v296
        %v1812 = vpop.f32.mrb[0].mxu0
        %v1813 = vadd.f32 0.0, %v1812
        %v1814 = vpop.f32.mrb[0].mxu0
        %v1815 = vadd.f32 0.0, %v1814
        %1816 = vmatprep.mubr.f32.mxu0 %v299
        %1817 = vmatmul.mubr.f32.gmra.mrb[0].mxu0 %v298
        %v1818 = vpop.f32.mrb[0].mxu0
        %v1819 = vadd.f32 0.0, %v1818
        %v1820 = vpop.f32.mrb[0].mxu0
        %v1821 = vadd.f32 0.0, %v1820
        %1822 = vmatprep.mubr.f32.mxu0 %v301
        %1823 = vmatmul.mubr.f32.gmra.mrb[0].mxu0 %v300
        %v1824 = vpop.f32.mrb[0].mxu0
        %v1825 = vadd.f32 0.0, %v1824
        %v1826 = vpop.f32.mrb[0].mxu0
        %v1827 = vadd.f32 0.0, %v1826
        %1828 = vmatprep.mubr.f32.mxu0 %v303
        %1829 = vmatmul.mubr.f32.gmra.mrb[0].mxu0 %v302
        %v1830 = vpop.f32.mrb[0].mxu0
        %v1831 = vadd.f32 0.0, %v1830
        %v1832 = vpop.f32.mrb[0].mxu0
        %v1833 = vadd.f32 0.0, %v1832
        %1834 = vmatprep.mubr.f32.mxu0 %v305
        %1835 = vmatmul.mubr.f32.gmra.mrb[0].mxu0 %v304
        %v1836 = vpop.f32.mrb[0].mxu0
        %v1837 = vadd.f32 0.0, %v1836
        %v1838 = vpop.f32.mrb[0].mxu0
        %v1839 = vadd.f32 0.0, %v1838
        %1840 = vmatprep.mubr.f32.mxu0 %v307
        %1841 = vmatmul.mubr.f32.gmra.mrb[0].mxu0 %v306
        %v1842 = vpop.f32.mrb[0].mxu0
        %v1843 = vadd.f32 0.0, %v1842
        %v1844 = vpop.f32.mrb[0].mxu0
        %v1845 = vadd.f32 0.0, %v1844
        %1846 = vdwg.mxu0
        %1847 = vst [vmem:[%s177] sm:$0xff] %v567
        %1848 = vst [vmem:[%s177 + $0x8] sm:$0xff] %v569
        %1849 = vst [vmem:[%s177 + $0x10] sm:$0xff] %v1016
        %1850 = vst [vmem:[%s177 + $0x18] sm:$0xff] %v1018
        %1851 = vst [vmem:[%s177 + $0x20] sm:$0xff] %v1465
        %1852 = vst [vmem:[%s177 + $0x28] sm:$0xff] %v1467
        %1853 = vst [vmem:[%s177 + $0x30] sm:$0xff] %v573
        %1854 = vst [vmem:[%s177 + $0x38] sm:$0xff] %v575
        %1855 = vst [vmem:[%s177 + $0x40] sm:$0xff] %v1022
        %1856 = vst [vmem:[%s177 + $0x48] sm:$0xff] %v1024
        %1857 = vst [vmem:[%s177 + $0x50] sm:$0xff] %v1471
        %1858 = vst [vmem:[%s177 + $0x58] sm:$0xff] %v1473
        %1859 = vst [vmem:[%s177 + $0x60] sm:$0xff] %v579
        %1860 = vst [vmem:[%s177 + $0x68] sm:$0xff] %v581
        %1861 = vst [vmem:[%s177 + $0x70] sm:$0xff] %v1028
        %1862 = vst [vmem:[%s177 + $0x78] sm:$0xff] %v1030
        %1863 = vst [vmem:[%s177 + $0x80] sm:$0xff] %v1477
        %1864 = vst [vmem:[%s177 + $0x88] sm:$0xff] %v1479
        %1865 = vst [vmem:[%s177 + $0x90] sm:$0xff] %v585
        %1866 = vst [vmem:[%s177 + $0x98] sm:$0xff] %v587
        %1867 = vst [vmem:[%s177 + $0xa0] sm:$0xff] %v1034
        %1868 = vst [vmem:[%s177 + $0xa8] sm:$0xff] %v1036
        %1869 = vst [vmem:[%s177 + $0xb0] sm:$0xff] %v1483
        %1870 = vst [vmem:[%s177 + $0xb8] sm:$0xff] %v1485
        %1871 = vst [vmem:[%s177 + $0xc0] sm:$0xff] %v591
        %1872 = vst [vmem:[%s177 + $0xc8] sm:$0xff] %v593
        %1873 = vst [vmem:[%s177 + $0xd0] sm:$0xff] %v1040
        %1874 = vst [vmem:[%s177 + $0xd8] sm:$0xff] %v1042
        %1875 = vst [vmem:[%s177 + $0xe0] sm:$0xff] %v1489
        %1876 = vst [vmem:[%s177 + $0xe8] sm:$0xff] %v1491
        %1877 = vst [vmem:[%s177 + $0xf0] sm:$0xff] %v597
        %1878 = vst [vmem:[%s177 + $0xf8] sm:$0xff] %v599
        %1879 = vst [vmem:[%s177 + $0x100] sm:$0xff] %v1046
        %1880 = vst [vmem:[%s177 + $0x108] sm:$0xff] %v1048
        %1881 = vst [vmem:[%s177 + $0x110] sm:$0xff] %v1495
        %1882 = vst [vmem:[%s177 + $0x118] sm:$0xff] %v1497
        %1883 = vst [vmem:[%s177 + $0x120] sm:$0xff] %v603
        %1884 = vst [vmem:[%s177 + $0x128] sm:$0xff] %v605
        %1885 = vst [vmem:[%s177 + $0x130] sm:$0xff] %v1052
        %1886 = vst [vmem:[%s177 + $0x138] sm:$0xff] %v1054
        %1887 = vst [vmem:[%s177 + $0x140] sm:$0xff] %v1501
        %1888 = vst [vmem:[%s177 + $0x148] sm:$0xff] %v1503
        %1889 = vst [vmem:[%s177 + $0x150] sm:$0xff] %v609
        %1890 = vst [vmem:[%s177 + $0x158] sm:$0xff] %v611
        %1891 = vst [vmem:[%s177 + $0x160] sm:$0xff] %v1058
        %1892 = vst [vmem:[%s177 + $0x168] sm:$0xff] %v1060
        %1893 = vst [vmem:[%s177 + $0x170] sm:$0xff] %v1507
        %1894 = vst [vmem:[%s177 + $0x178] sm:$0xff] %v1509
        %1895 = vst [vmem:[%s177 + $0x180] sm:$0xff] %v615
        %1896 = vst [vmem:[%s177 + $0x188] sm:$0xff] %v617
        %1897 = vst [vmem:[%s177 + $0x190] sm:$0xff] %v1064
        %1898 = vst [vmem:[%s177 + $0x198] sm:$0xff] %v1066
        %1899 = vst [vmem:[%s177 + $0x1a0] sm:$0xff] %v1513
        %1900 = vst [vmem:[%s177 + $0x1a8] sm:$0xff] %v1515
        %1901 = vst [vmem:[%s177 + $0x1b0] sm:$0xff] %v621
        %1902 = vst [vmem:[%s177 + $0x1b8] sm:$0xff] %v623
        %1903 = vst [vmem:[%s177 + $0x1c0] sm:$0xff] %v1070
        %1904 = vst [vmem:[%s177 + $0x1c8] sm:$0xff] %v1072
        %1905 = vst [vmem:[%s177 + $0x1d0] sm:$0xff] %v1519
        %1906 = vst [vmem:[%s177 + $0x1d8] sm:$0xff] %v1521
        %1907 = vst [vmem:[%s177 + $0x1e0] sm:$0xff] %v627
        %1908 = vst [vmem:[%s177 + $0x1e8] sm:$0xff] %v629
        %1909 = vst [vmem:[%s177 + $0x1f0] sm:$0xff] %v1076
        %1910 = vst [vmem:[%s177 + $0x1f8] sm:$0xff] %v1078
        %1911 = vst [vmem:[%s177 + $0x200] sm:$0xff] %v1525
        %1912 = vst [vmem:[%s177 + $0x208] sm:$0xff] %v1527
        %1913 = vst [vmem:[%s177 + $0x210] sm:$0xff] %v633
        %1914 = vst [vmem:[%s177 + $0x218] sm:$0xff] %v635
        %1915 = vst [vmem:[%s177 + $0x220] sm:$0xff] %v1082
        %1916 = vst [vmem:[%s177 + $0x228] sm:$0xff] %v1084
        %1917 = vst [vmem:[%s177 + $0x230] sm:$0xff] %v1531
        %1918 = vst [vmem:[%s177 + $0x238] sm:$0xff] %v1533
        %1919 = vst [vmem:[%s177 + $0x240] sm:$0xff] %v639
        %1920 = vst [vmem:[%s177 + $0x248] sm:$0xff] %v641
        %1921 = vst [vmem:[%s177 + $0x250] sm:$0xff] %v1088
        %1922 = vst [vmem:[%s177 + $0x258] sm:$0xff] %v1090
        %1923 = vst [vmem:[%s177 + $0x260] sm:$0xff] %v1537
        %1924 = vst [vmem:[%s177 + $0x268] sm:$0xff] %v1539
        %1925 = vst [vmem:[%s177 + $0x270] sm:$0xff] %v645
        %1926 = vst [vmem:[%s177 + $0x278] sm:$0xff] %v647
        %1927 = vst [vmem:[%s177 + $0x280] sm:$0xff] %v1094
        %1928 = vst [vmem:[%s177 + $0x288] sm:$0xff] %v1096
        %1929 = vst [vmem:[%s177 + $0x290] sm:$0xff] %v1543
        %1930 = vst [vmem:[%s177 + $0x298] sm:$0xff] %v1545
        %1931 = vst [vmem:[%s177 + $0x2a0] sm:$0xff] %v651
        %1932 = vst [vmem:[%s177 + $0x2a8] sm:$0xff] %v653
        %1933 = vst [vmem:[%s177 + $0x2b0] sm:$0xff] %v1100
        %1934 = vst [vmem:[%s177 + $0x2b8] sm:$0xff] %v1102
        %1935 = vst [vmem:[%s177 + $0x2c0] sm:$0xff] %v1549
        %1936 = vst [vmem:[%s177 + $0x2c8] sm:$0xff] %v1551
        %1937 = vst [vmem:[%s177 + $0x2d0] sm:$0xff] %v657
        %1938 = vst [vmem:[%s177 + $0x2d8] sm:$0xff] %v659
        %1939 = vst [vmem:[%s177 + $0x2e0] sm:$0xff] %v1106
        %1940 = vst [vmem:[%s177 + $0x2e8] sm:$0xff] %v1108
        %1941 = vst [vmem:[%s177 + $0x2f0] sm:$0xff] %v1555
        %1942 = vst [vmem:[%s177 + $0x2f8] sm:$0xff] %v1557
        %1943 = vst [vmem:[%s177 + $0x300] sm:$0xff] %v663
        %1944 = vst [vmem:[%s177 + $0x308] sm:$0xff] %v665
        %1945 = vst [vmem:[%s177 + $0x310] sm:$0xff] %v1112
        %1946 = vst [vmem:[%s177 + $0x318] sm:$0xff] %v1114
        %1947 = vst [vmem:[%s177 + $0x320] sm:$0xff] %v1561
        %1948 = vst [vmem:[%s177 + $0x328] sm:$0xff] %v1563
        %1949 = vst [vmem:[%s177 + $0x330] sm:$0xff] %v669
        %1950 = vst [vmem:[%s177 + $0x338] sm:$0xff] %v671
        %1951 = vst [vmem:[%s177 + $0x340] sm:$0xff] %v1118
        %1952 = vst [vmem:[%s177 + $0x348] sm:$0xff] %v1120
        %1953 = vst [vmem:[%s177 + $0x350] sm:$0xff] %v1567
        %1954 = vst [vmem:[%s177 + $0x358] sm:$0xff] %v1569
        %1955 = vst [vmem:[%s177 + $0x360] sm:$0xff] %v675
        %1956 = vst [vmem:[%s177 + $0x368] sm:$0xff] %v677
        %1957 = vst [vmem:[%s177 + $0x370] sm:$0xff] %v1124
        %1958 = vst [vmem:[%s177 + $0x378] sm:$0xff] %v1126
        %1959 = vst [vmem:[%s177 + $0x380] sm:$0xff] %v1573
        %1960 = vst [vmem:[%s177 + $0x388] sm:$0xff] %v1575
        %1961 = vst [vmem:[%s177 + $0x390] sm:$0xff] %v681
        %1962 = vst [vmem:[%s177 + $0x398] sm:$0xff] %v683
        %1963 = vst [vmem:[%s177 + $0x3a0] sm:$0xff] %v1130
        %1964 = vst [vmem:[%s177 + $0x3a8] sm:$0xff] %v1132
        %1965 = vst [vmem:[%s177 + $0x3b0] sm:$0xff] %v1579
        %1966 = vst [vmem:[%s177 + $0x3b8] sm:$0xff] %v1581
        %1967 = vst [vmem:[%s177 + $0x3c0] sm:$0xff] %v687
        %1968 = vst [vmem:[%s177 + $0x3c8] sm:$0xff] %v689
        %1969 = vst [vmem:[%s177 + $0x3d0] sm:$0xff] %v1136
        %1970 = vst [vmem:[%s177 + $0x3d8] sm:$0xff] %v1138
        %1971 = vst [vmem:[%s177 + $0x3e0] sm:$0xff] %v1585
        %1972 = vst [vmem:[%s177 + $0x3e8] sm:$0xff] %v1587
        %1973 = vst [vmem:[%s177 + $0x3f0] sm:$0xff] %v693
        %1974 = vst [vmem:[%s177 + $0x3f8] sm:$0xff] %v695
        %1975 = vst [vmem:[%s177 + $0x400] sm:$0xff] %v1142
        %1976 = vst [vmem:[%s177 + $0x408] sm:$0xff] %v1144
        %1977 = vst [vmem:[%s177 + $0x410] sm:$0xff] %v1591
        %1978 = vst [vmem:[%s177 + $0x418] sm:$0xff] %v1593
        %1979 = vst [vmem:[%s177 + $0x420] sm:$0xff] %v699
        %1980 = vst [vmem:[%s177 + $0x428] sm:$0xff] %v701
        %1981 = vst [vmem:[%s177 + $0x430] sm:$0xff] %v1148
        %1982 = vst [vmem:[%s177 + $0x438] sm:$0xff] %v1150
        %1983 = vst [vmem:[%s177 + $0x440] sm:$0xff] %v1597
        %1984 = vst [vmem:[%s177 + $0x448] sm:$0xff] %v1599
        %1985 = vst [vmem:[%s177 + $0x450] sm:$0xff] %v705
        %1986 = vst [vmem:[%s177 + $0x458] sm:$0xff] %v707
        %1987 = vst [vmem:[%s177 + $0x460] sm:$0xff] %v1154
        %1988 = vst [vmem:[%s177 + $0x468] sm:$0xff] %v1156
        %1989 = vst [vmem:[%s177 + $0x470] sm:$0xff] %v1603
        %1990 = vst [vmem:[%s177 + $0x478] sm:$0xff] %v1605
        %1991 = vst [vmem:[%s177 + $0x480] sm:$0xff] %v711
        %1992 = vst [vmem:[%s177 + $0x488] sm:$0xff] %v713
        %1993 = vst [vmem:[%s177 + $0x490] sm:$0xff] %v1160
        %1994 = vst [vmem:[%s177 + $0x498] sm:$0xff] %v1162
        %1995 = vst [vmem:[%s177 + $0x4a0] sm:$0xff] %v1609
        %1996 = vst [vmem:[%s177 + $0x4a8] sm:$0xff] %v1611
        %1997 = vst [vmem:[%s177 + $0x4b0] sm:$0xff] %v717
        %1998 = vst [vmem:[%s177 + $0x4b8] sm:$0xff] %v719
        %1999 = vst [vmem:[%s177 + $0x4c0] sm:$0xff] %v1166
        %2000 = vst [vmem:[%s177 + $0x4c8] sm:$0xff] %v1168
        %2001 = vst [vmem:[%s177 + $0x4d0] sm:$0xff] %v1615
        %2002 = vst [vmem:[%s177 + $0x4d8] sm:$0xff] %v1617
        %2003 = vst [vmem:[%s177 + $0x4e0] sm:$0xff] %v723
        %2004 = vst [vmem:[%s177 + $0x4e8] sm:$0xff] %v725
        %2005 = vst [vmem:[%s177 + $0x4f0] sm:$0xff] %v1172
        %2006 = vst [vmem:[%s177 + $0x4f8] sm:$0xff] %v1174
        %2007 = vst [vmem:[%s177 + $0x500] sm:$0xff] %v1621
        %2008 = vst [vmem:[%s177 + $0x508] sm:$0xff] %v1623
        %2009 = vst [vmem:[%s177 + $0x510] sm:$0xff] %v729
        %2010 = vst [vmem:[%s177 + $0x518] sm:$0xff] %v731
        %2011 = vst [vmem:[%s177 + $0x520] sm:$0xff] %v1178
        %2012 = vst [vmem:[%s177 + $0x528] sm:$0xff] %v1180
        %2013 = vst [vmem:[%s177 + $0x530] sm:$0xff] %v1627
        %2014 = vst [vmem:[%s177 + $0x538] sm:$0xff] %v1629
        %2015 = vst [vmem:[%s177 + $0x540] sm:$0xff] %v735
        %2016 = vst [vmem:[%s177 + $0x548] sm:$0xff] %v737
        %2017 = vst [vmem:[%s177 + $0x550] sm:$0xff] %v1184
        %2018 = vst [vmem:[%s177 + $0x558] sm:$0xff] %v1186
        %2019 = vst [vmem:[%s177 + $0x560] sm:$0xff] %v1633
        %2020 = vst [vmem:[%s177 + $0x568] sm:$0xff] %v1635
        %2021 = vst [vmem:[%s177 + $0x570] sm:$0xff] %v741
        %2022 = vst [vmem:[%s177 + $0x578] sm:$0xff] %v743
        %2023 = vst [vmem:[%s177 + $0x580] sm:$0xff] %v1190
        %2024 = vst [vmem:[%s177 + $0x588] sm:$0xff] %v1192
        %2025 = vst [vmem:[%s177 + $0x590] sm:$0xff] %v1639
        %2026 = vst [vmem:[%s177 + $0x598] sm:$0xff] %v1641
        %2027 = vst [vmem:[%s177 + $0x5a0] sm:$0xff] %v747
        %2028 = vst [vmem:[%s177 + $0x5a8] sm:$0xff] %v749
        %2029 = vst [vmem:[%s177 + $0x5b0] sm:$0xff] %v1196
        %2030 = vst [vmem:[%s177 + $0x5b8] sm:$0xff] %v1198
        %2031 = vst [vmem:[%s177 + $0x5c0] sm:$0xff] %v1645
        %2032 = vst [vmem:[%s177 + $0x5c8] sm:$0xff] %v1647
        %2033 = vst [vmem:[%s177 + $0x5d0] sm:$0xff] %v753
        %2034 = vst [vmem:[%s177 + $0x5d8] sm:$0xff] %v755
        %2035 = vst [vmem:[%s177 + $0x5e0] sm:$0xff] %v1202
        %2036 = vst [vmem:[%s177 + $0x5e8] sm:$0xff] %v1204
        %2037 = vst [vmem:[%s177 + $0x5f0] sm:$0xff] %v1651
        %2038 = vst [vmem:[%s177 + $0x5f8] sm:$0xff] %v1653
        %2039 = vst [vmem:[%s177 + $0x600] sm:$0xff] %v759
        %2040 = vst [vmem:[%s177 + $0x608] sm:$0xff] %v761
        %2041 = vst [vmem:[%s177 + $0x610] sm:$0xff] %v1208
        %2042 = vst [vmem:[%s177 + $0x618] sm:$0xff] %v1210
        %2043 = vst [vmem:[%s177 + $0x620] sm:$0xff] %v1657
        %2044 = vst [vmem:[%s177 + $0x628] sm:$0xff] %v1659
        %2045 = vst [vmem:[%s177 + $0x630] sm:$0xff] %v765
        %2046 = vst [vmem:[%s177 + $0x638] sm:$0xff] %v767
        %2047 = vst [vmem:[%s177 + $0x640] sm:$0xff] %v1214
        %2048 = vst [vmem:[%s177 + $0x648] sm:$0xff] %v1216
        %2049 = vst [vmem:[%s177 + $0x650] sm:$0xff] %v1663
        %2050 = vst [vmem:[%s177 + $0x658] sm:$0xff] %v1665
        %2051 = vst [vmem:[%s177 + $0x660] sm:$0xff] %v771
        %2052 = vst [vmem:[%s177 + $0x668] sm:$0xff] %v773
        %2053 = vst [vmem:[%s177 + $0x670] sm:$0xff] %v1220
        %2054 = vst [vmem:[%s177 + $0x678] sm:$0xff] %v1222
        %2055 = vst [vmem:[%s177 + $0x680] sm:$0xff] %v1669
        %2056 = vst [vmem:[%s177 + $0x688] sm:$0xff] %v1671
        %2057 = vst [vmem:[%s177 + $0x690] sm:$0xff] %v777
        %2058 = vst [vmem:[%s177 + $0x698] sm:$0xff] %v779
        %2059 = vst [vmem:[%s177 + $0x6a0] sm:$0xff] %v1226
        %2060 = vst [vmem:[%s177 + $0x6a8] sm:$0xff] %v1228
        %2061 = vst [vmem:[%s177 + $0x6b0] sm:$0xff] %v1675
        %2062 = vst [vmem:[%s177 + $0x6b8] sm:$0xff] %v1677
        %2063 = vst [vmem:[%s177 + $0x6c0] sm:$0xff] %v783
        %2064 = vst [vmem:[%s177 + $0x6c8] sm:$0xff] %v785
        %2065 = vst [vmem:[%s177 + $0x6d0] sm:$0xff] %v1232
        %2066 = vst [vmem:[%s177 + $0x6d8] sm:$0xff] %v1234
        %2067 = vst [vmem:[%s177 + $0x6e0] sm:$0xff] %v1681
        %2068 = vst [vmem:[%s177 + $0x6e8] sm:$0xff] %v1683
        %2069 = vst [vmem:[%s177 + $0x6f0] sm:$0xff] %v789
        %2070 = vst [vmem:[%s177 + $0x6f8] sm:$0xff] %v791
        %2071 = vst [vmem:[%s177 + $0x700] sm:$0xff] %v1238
        %2072 = vst [vmem:[%s177 + $0x708] sm:$0xff] %v1240
        %2073 = vst [vmem:[%s177 + $0x710] sm:$0xff] %v1687
        %2074 = vst [vmem:[%s177 + $0x718] sm:$0xff] %v1689
        %2075 = vst [vmem:[%s177 + $0x720] sm:$0xff] %v795
        %2076 = vst [vmem:[%s177 + $0x728] sm:$0xff] %v797
        %2077 = vst [vmem:[%s177 + $0x730] sm:$0xff] %v1244
        %2078 = vst [vmem:[%s177 + $0x738] sm:$0xff] %v1246
        %2079 = vst [vmem:[%s177 + $0x740] sm:$0xff] %v1693
        %2080 = vst [vmem:[%s177 + $0x748] sm:$0xff] %v1695
        %2081 = vst [vmem:[%s177 + $0x750] sm:$0xff] %v801
        %2082 = vst [vmem:[%s177 + $0x758] sm:$0xff] %v803
        %2083 = vst [vmem:[%s177 + $0x760] sm:$0xff] %v1250
        %2084 = vst [vmem:[%s177 + $0x768] sm:$0xff] %v1252
        %2085 = vst [vmem:[%s177 + $0x770] sm:$0xff] %v1699
        %2086 = vst [vmem:[%s177 + $0x778] sm:$0xff] %v1701
        %2087 = vst [vmem:[%s177 + $0x780] sm:$0xff] %v807
        %2088 = vst [vmem:[%s177 + $0x788] sm:$0xff] %v809
        %2089 = vst [vmem:[%s177 + $0x790] sm:$0xff] %v1256
        %2090 = vst [vmem:[%s177 + $0x798] sm:$0xff] %v1258
        %2091 = vst [vmem:[%s177 + $0x7a0] sm:$0xff] %v1705
        %2092 = vst [vmem:[%s177 + $0x7a8] sm:$0xff] %v1707
        %2093 = vst [vmem:[%s177 + $0x7b0] sm:$0xff] %v813
        %2094 = vst [vmem:[%s177 + $0x7b8] sm:$0xff] %v815
        %2095 = vst [vmem:[%s177 + $0x7c0] sm:$0xff] %v1262
        %2096 = vst [vmem:[%s177 + $0x7c8] sm:$0xff] %v1264
        %2097 = vst [vmem:[%s177 + $0x7d0] sm:$0xff] %v1711
        %2098 = vst [vmem:[%s177 + $0x7d8] sm:$0xff] %v1713
        %2099 = vst [vmem:[%s177 + $0x7e0] sm:$0xff] %v819
        %2100 = vst [vmem:[%s177 + $0x7e8] sm:$0xff] %v821
        %2101 = vst [vmem:[%s177 + $0x7f0] sm:$0xff] %v1268
        %2102 = vst [vmem:[%s177 + $0x7f8] sm:$0xff] %v1270
        %2103 = vst [vmem:[%s177 + $0x800] sm:$0xff] %v1717
        %2104 = vst [vmem:[%s177 + $0x808] sm:$0xff] %v1719
        %2105 = vst [vmem:[%s177 + $0x810] sm:$0xff] %v825
        %2106 = vst [vmem:[%s177 + $0x818] sm:$0xff] %v827
        %2107 = vst [vmem:[%s177 + $0x820] sm:$0xff] %v1274
        %2108 = vst [vmem:[%s177 + $0x828] sm:$0xff] %v1276
        %2109 = vst [vmem:[%s177 + $0x830] sm:$0xff] %v1723
        %2110 = vst [vmem:[%s177 + $0x838] sm:$0xff] %v1725
        %2111 = vst [vmem:[%s177 + $0x840] sm:$0xff] %v831
        %2112 = vst [vmem:[%s177 + $0x848] sm:$0xff] %v833
        %2113 = vst [vmem:[%s177 + $0x850] sm:$0xff] %v1280
        %2114 = vst [vmem:[%s177 + $0x858] sm:$0xff] %v1282
        %2115 = vst [vmem:[%s177 + $0x860] sm:$0xff] %v1729
        %2116 = vst [vmem:[%s177 + $0x868] sm:$0xff] %v1731
        %2117 = vst [vmem:[%s177 + $0x870] sm:$0xff] %v837
        %2118 = vst [vmem:[%s177 + $0x878] sm:$0xff] %v839
        %2119 = vst [vmem:[%s177 + $0x880] sm:$0xff] %v1286
        %2120 = vst [vmem:[%s177 + $0x888] sm:$0xff] %v1288
        %2121 = vst [vmem:[%s177 + $0x890] sm:$0xff] %v1735
        %2122 = vst [vmem:[%s177 + $0x898] sm:$0xff] %v1737
        %2123 = vst [vmem:[%s177 + $0x8a0] sm:$0xff] %v843
        %2124 = vst [vmem:[%s177 + $0x8a8] sm:$0xff] %v845
        %2125 = vst [vmem:[%s177 + $0x8b0] sm:$0xff] %v1292
        %2126 = vst [vmem:[%s177 + $0x8b8] sm:$0xff] %v1294
        %2127 = vst [vmem:[%s177 + $0x8c0] sm:$0xff] %v1741
        %2128 = vst [vmem:[%s177 + $0x8c8] sm:$0xff] %v1743
        %2129 = vst [vmem:[%s177 + $0x8d0] sm:$0xff] %v849
        %2130 = vst [vmem:[%s177 + $0x8d8] sm:$0xff] %v851
        %2131 = vst [vmem:[%s177 + $0x8e0] sm:$0xff] %v1298
        %2132 = vst [vmem:[%s177 + $0x8e8] sm:$0xff] %v1300
        %2133 = vst [vmem:[%s177 + $0x8f0] sm:$0xff] %v1747
        %2134 = vst [vmem:[%s177 + $0x8f8] sm:$0xff] %v1749
        %2135 = vst [vmem:[%s177 + $0x900] sm:$0xff] %v855
        %2136 = vst [vmem:[%s177 + $0x908] sm:$0xff] %v857
        %2137 = vst [vmem:[%s177 + $0x910] sm:$0xff] %v1304
        %2138 = vst [vmem:[%s177 + $0x918] sm:$0xff] %v1306
        %2139 = vst [vmem:[%s177 + $0x920] sm:$0xff] %v1753
        %2140 = vst [vmem:[%s177 + $0x928] sm:$0xff] %v1755
        %2141 = vst [vmem:[%s177 + $0x930] sm:$0xff] %v861
        %2142 = vst [vmem:[%s177 + $0x938] sm:$0xff] %v863
        %2143 = vst [vmem:[%s177 + $0x940] sm:$0xff] %v1310
        %2144 = vst [vmem:[%s177 + $0x948] sm:$0xff] %v1312
        %2145 = vst [vmem:[%s177 + $0x950] sm:$0xff] %v1759
        %2146 = vst [vmem:[%s177 + $0x958] sm:$0xff] %v1761
        %2147 = vst [vmem:[%s177 + $0x960] sm:$0xff] %v867
        %2148 = vst [vmem:[%s177 + $0x968] sm:$0xff] %v869
        %2149 = vst [vmem:[%s177 + $0x970] sm:$0xff] %v1316
        %2150 = vst [vmem:[%s177 + $0x978] sm:$0xff] %v1318
        %2151 = vst [vmem:[%s177 + $0x980] sm:$0xff] %v1765
        %2152 = vst [vmem:[%s177 + $0x988] sm:$0xff] %v1767
        %2153 = vst [vmem:[%s177 + $0x990] sm:$0xff] %v873
        %2154 = vst [vmem:[%s177 + $0x998] sm:$0xff] %v875
        %2155 = vst [vmem:[%s177 + $0x9a0] sm:$0xff] %v1322
        %2156 = vst [vmem:[%s177 + $0x9a8] sm:$0xff] %v1324
        %2157 = vst [vmem:[%s177 + $0x9b0] sm:$0xff] %v1771
        %2158 = vst [vmem:[%s177 + $0x9b8] sm:$0xff] %v1773
        %2159 = vst [vmem:[%s177 + $0x9c0] sm:$0xff] %v879
        %2160 = vst [vmem:[%s177 + $0x9c8] sm:$0xff] %v881
        %2161 = vst [vmem:[%s177 + $0x9d0] sm:$0xff] %v1328
        %2162 = vst [vmem:[%s177 + $0x9d8] sm:$0xff] %v1330
        %2163 = vst [vmem:[%s177 + $0x9e0] sm:$0xff] %v1777
        %2164 = vst [vmem:[%s177 + $0x9e8] sm:$0xff] %v1779
        %2165 = vst [vmem:[%s177 + $0x9f0] sm:$0xff] %v885
        %2166 = vst [vmem:[%s177 + $0x9f8] sm:$0xff] %v887
        %2167 = vst [vmem:[%s177 + $0xa00] sm:$0xff] %v1334
        %2168 = vst [vmem:[%s177 + $0xa08] sm:$0xff] %v1336
        %2169 = vst [vmem:[%s177 + $0xa10] sm:$0xff] %v1783
        %2170 = vst [vmem:[%s177 + $0xa18] sm:$0xff] %v1785
        %2171 = vst [vmem:[%s177 + $0xa20] sm:$0xff] %v891
        %2172 = vst [vmem:[%s177 + $0xa28] sm:$0xff] %v893
        %2173 = vst [vmem:[%s177 + $0xa30] sm:$0xff] %v1340
        %2174 = vst [vmem:[%s177 + $0xa38] sm:$0xff] %v1342
        %2175 = vst [vmem:[%s177 + $0xa40] sm:$0xff] %v1789
        %2176 = vst [vmem:[%s177 + $0xa48] sm:$0xff] %v1791
        %2177 = vst [vmem:[%s177 + $0xa50] sm:$0xff] %v897
        %2178 = vst [vmem:[%s177 + $0xa58] sm:$0xff] %v899
        %2179 = vst [vmem:[%s177 + $0xa60] sm:$0xff] %v1346
        %2180 = vst [vmem:[%s177 + $0xa68] sm:$0xff] %v1348
        %2181 = vst [vmem:[%s177 + $0xa70] sm:$0xff] %v1795
        %2182 = vst [vmem:[%s177 + $0xa78] sm:$0xff] %v1797
        %2183 = vst [vmem:[%s177 + $0xa80] sm:$0xff] %v903
        %2184 = vst [vmem:[%s177 + $0xa88] sm:$0xff] %v905
        %2185 = vst [vmem:[%s177 + $0xa90] sm:$0xff] %v1352
        %2186 = vst [vmem:[%s177 + $0xa98] sm:$0xff] %v1354
        %2187 = vst [vmem:[%s177 + $0xaa0] sm:$0xff] %v1801
        %2188 = vst [vmem:[%s177 + $0xaa8] sm:$0xff] %v1803
        %2189 = vst [vmem:[%s177 + $0xab0] sm:$0xff] %v909
        %2190 = vst [vmem:[%s177 + $0xab8] sm:$0xff] %v911
        %2191 = vst [vmem:[%s177 + $0xac0] sm:$0xff] %v1358
        %2192 = vst [vmem:[%s177 + $0xac8] sm:$0xff] %v1360
        %2193 = vst [vmem:[%s177 + $0xad0] sm:$0xff] %v1807
        %2194 = vst [vmem:[%s177 + $0xad8] sm:$0xff] %v1809
        %2195 = vst [vmem:[%s177 + $0xae0] sm:$0xff] %v915
        %2196 = vst [vmem:[%s177 + $0xae8] sm:$0xff] %v917
        %2197 = vst [vmem:[%s177 + $0xaf0] sm:$0xff] %v1364
        %2198 = vst [vmem:[%s177 + $0xaf8] sm:$0xff] %v1366
        %2199 = vst [vmem:[%s177 + $0xb00] sm:$0xff] %v1813
        %2200 = vst [vmem:[%s177 + $0xb08] sm:$0xff] %v1815
        %2201 = vst [vmem:[%s177 + $0xb10] sm:$0xff] %v921
        %2202 = vst [vmem:[%s177 + $0xb18] sm:$0xff] %v923
        %2203 = vst [vmem:[%s177 + $0xb20] sm:$0xff] %v1370
        %2204 = vst [vmem:[%s177 + $0xb28] sm:$0xff] %v1372
        %2205 = vst [vmem:[%s177 + $0xb30] sm:$0xff] %v1819
        %2206 = vst [vmem:[%s177 + $0xb38] sm:$0xff] %v1821
        %2207 = vst [vmem:[%s177 + $0xb40] sm:$0xff] %v927
        %2208 = vst [vmem:[%s177 + $0xb48] sm:$0xff] %v929
        %2209 = vst [vmem:[%s177 + $0xb50] sm:$0xff] %v1376
        %2210 = vst [vmem:[%s177 + $0xb58] sm:$0xff] %v1378
        %2211 = vst [vmem:[%s177 + $0xb60] sm:$0xff] %v1825
        %2212 = vst [vmem:[%s177 + $0xb68] sm:$0xff] %v1827
        %2213 = vst [vmem:[%s177 + $0xb70] sm:$0xff] %v933
        %2214 = vst [vmem:[%s177 + $0xb78] sm:$0xff] %v935
        %2215 = vst [vmem:[%s177 + $0xb80] sm:$0xff] %v1382
        %2216 = vst [vmem:[%s177 + $0xb88] sm:$0xff] %v1384
        %2217 = vst [vmem:[%s177 + $0xb90] sm:$0xff] %v1831
        %2218 = vst [vmem:[%s177 + $0xb98] sm:$0xff] %v1833
        %2219 = vst [vmem:[%s177 + $0xba0] sm:$0xff] %v939
        %2220 = vst [vmem:[%s177 + $0xba8] sm:$0xff] %v941
        %2221 = vst [vmem:[%s177 + $0xbb0] sm:$0xff] %v1388
        %2222 = vst [vmem:[%s177 + $0xbb8] sm:$0xff] %v1390
        %2223 = vst [vmem:[%s177 + $0xbc0] sm:$0xff] %v1837
        %2224 = vst [vmem:[%s177 + $0xbc8] sm:$0xff] %v1839
        %2225 = vst [vmem:[%s177 + $0xbd0] sm:$0xff] %v945
        %2226 = vst [vmem:[%s177 + $0xbd8] sm:$0xff] %v947
        %2227 = vst [vmem:[%s177 + $0xbe0] sm:$0xff] %v1394
        %2228 = vst [vmem:[%s177 + $0xbe8] sm:$0xff] %v1396
        %2229 = vst [vmem:[%s177 + $0xbf0] sm:$0xff] %v1843
        %2230 = vst [vmem:[%s177 + $0xbf8] sm:$0xff] %v1845
        %s2231 = sand.u32 %s75, 1
        %s2232 = scalar_lea.sflag [#allocation4], %s2231
        %s2233 = sand.u32 %s75, 1
        %s2234 = smul.addr %s2233, 3072
        %s2235 = scalar_lea.vmem [#allocation7], %s2234
        // Predicated region
        $region37: #{tpu_custom_call.1} parent=27 // pred_check
          %p2236 = pneg %p85
        $region38: #{tpu_custom_call.1} parent=27 // pred_check_branch
          %2238 = sbr.rel (%p2236) target = $region40
        $region39: #{tpu_custom_call.1} parent=27 // pred_region
          %s2239 = smul.u32 64, %s20
          %s2241 = ssub.s32 49152, 49152
          %2242 = vsyncadd %s2232, %s2241
          %s2243 = smul.addr %s2239, 6
          %s2244 = smul.addr %s2243, 128
          %s2245 = scalar_lea.hbm %s2, %s2244
          %s2246 = sshll.u32 %s2235, 4
          %s2247 = int_to_ptr.vmem [resolvable:$true] %s2246
          %2252 = dma.vmem_to_hbm [thread:$0]  %s2247, 49152, %s2245, %s2232, 768, 768, 48
        $region40: #{tpu_custom_call.1} parent=27 // pred_fallthru
          _
      $region28: #{tpu_custom_call.1} parent=5 // pred_fallthru
        _
      %p2253 = scmp.le.s32.totalorder 2, %s15
      // Predicated region
      $region41: #{tpu_custom_call.1} parent=5 // pred_check
        %p2254 = pneg %p2253
      $region42: #{tpu_custom_call.1} parent=5 // pred_check_branch
        %2256 = sbr.rel (%p2254) target = $region44
      $region43: #{tpu_custom_call.1} parent=5 // pred_region
        %s2257 = ssub.s32 %s15, 2
        // Predicated region
        $region45: #{tpu_custom_call.1} parent=43 // pred_check
          %p2258 = pneg %p91
        $region46: #{tpu_custom_call.1} parent=43 // pred_check_branch
          %2260 = sbr.rel (%p2258) target = $region48
        $region47: #{tpu_custom_call.1} parent=43 // pred_region
          %s2261 = sand.u32 %s76, 1
          %s2262 = scalar_lea.sflag [#allocation4], %s2261
          %s2263 = sand.u32 %s76, 1
          %s2264 = smul.addr %s2263, 3072
          %s2265 = scalar_lea.vmem [#allocation7], %s2264
          %2266 = dma.done %s2262, 49152
        $region48: #{tpu_custom_call.1} parent=43 // pred_fallthru
          _
      $region44: #{tpu_custom_call.1} parent=5 // pred_fallthru
        _
    $region6: #{tpu_custom_call.1} parent=1 // loop_footer
      %s19 = sadd.s32 1, %s15
    $region7: #{tpu_custom_call.1} parent=1 // loop_footer_branch
      %14 = sbr.rel target = $region3
    $region8: #{tpu_custom_call.1} parent=1 // loop_exit
      _
    %2267 = vsyncpa [#allocation3], 1
    %s2268 = scalar_lea.sflag [#allocation3], 1
    %2269 = vsyncpa %s2268, 1
    %2270 = vsyncpa [#allocation6], 1
    %2271 = vsyncpa [#allocation4], 1
    %s2272 = scalar_lea.sflag [#allocation4], 1
    %2273 = vsyncpa %s2272, 1

</llo_original>
